<compile_context>
chip_gen: v7x
topology: tpu7x:2x2x1
jax: 0.10.0
libtpu: 0.0.40
codegen_flags: <defaults>
</compile_context>

<pallas_src>
import jax
import jax.numpy as jnp
from jax import lax
from jax.experimental import pallas as pl
from jax.experimental.pallas import tpu as pltpu

EPS = 1e-8          # matches torch.nn.functional.cosine_similarity default eps
PATCH = 16          # synthetic patch size
EMBED_DIM = 256     # synthetic hidden width (small stand-in for 1024)
PROJ_DIM = 128      # synthetic projection width (small stand-in for 768)
RESIZE_TO = 224     # v2.Resize(224)
NPATCH_SIDE = RESIZE_TO // PATCH           # 14
NPATCHES = NPATCH_SIDE * NPATCH_SIDE       # 196
TM = 128            # M tile of the patch-embed matmul (multiple of 8/128)


def _make_fused_kernel(batch):
    """Fused patch-embed -> mean-pool -> projection -> cosine loss kernel."""
    inv_np = 1.0 / float(NPATCHES)
    inv_b = 1.0 / float(batch)

    def kernel(patch_ref, pool_ref, wpatch_ref, wproj_ref, text_ref,
               o_ref, acc_ref):
        m = pl.program_id(0)

        @pl.when(m == 0)
        def _init():
            acc_ref[...] = jnp.zeros_like(acc_ref)

        # Patch embedding: (TM, 768) @ (768, 256), bf16 inputs, f32 accumulate.
        emb = jnp.dot(patch_ref[...], wpatch_ref[...],
                      preferred_element_type=jnp.float32)
        # Per-batch pooling as an MXU matmul against a 0/1 pooling matrix:
        # (B_pad, TM) @ (TM, 256) accumulated in VMEM (avoids a sublane-axis
        # XLU mean and the (B,196,256) HBM intermediate).
        acc_ref[...] += jnp.dot(pool_ref[...], emb.astype(jnp.bfloat16),
                                preferred_element_type=jnp.float32)

        @pl.when(m == pl.num_programs(0) - 1)
        def _finalize():
            pooled = acc_ref[...] * inv_np                          # (B_pad, E)
            img = jnp.dot(pooled.astype(jnp.bfloat16), wproj_ref[...],
                          preferred_element_type=jnp.float32)       # (B_pad, P)
            txt = text_ref[...]                                     # (1, P), unit norm
            dots = jnp.sum(img * txt, axis=-1, keepdims=True)       # (B_pad, 1)
            sq = jnp.sum(img * img, axis=-1, keepdims=True)         # (B_pad, 1)
            # max(||img||, eps) in denominator == rsqrt(max(||img||^2, eps^2));
            # rsqrt runs on the EUP slot instead of a VPU sqrt+divide.
            sim = dots * lax.rsqrt(jnp.maximum(sq, EPS * EPS))
            # Padded batch rows are exactly zero -> contribute 0 to the sum.
            o_ref[0, 0] = 1.0 - jnp.sum(sim) * inv_b

    return kernel


def cosine_loss_forward(gen_image, w_patch, w_proj, text_embed):
    b, c, h, w = gen_image.shape

    # 1) clamp + scale (plain jnp; XLA fuses it into the resize read).
    x = jnp.clip(gen_image, 0.0, 1.0) * 255.0

    # 2) Resize(224).
    # TODO(synk): torchvision v2.Resize uses antialiased bilinear; plain
    # bilinear is used here.
    x = jax.image.resize(x, (b, c, RESIZE_TO, RESIZE_TO), method="linear")

    # 3) Patchify to (B*196, C*16*16).
    # TODO(synk): patchify could be folded into the kernel with an Element
    # index_map to avoid the transposed HBM copy; negligible at these sizes.
    patches = x.reshape(b, c, NPATCH_SIDE, PATCH, NPATCH_SIDE, PATCH)
    patches = patches.transpose(0, 2, 4, 1, 3, 5)
    patches = patches.reshape(b * NPATCHES, c * PATCH * PATCH)

    m = b * NPATCHES
    k = c * PATCH * PATCH                       # 768 for C=3
    m_pad = ((m + TM - 1) // TM) * TM
    b_pad = ((b + 7) // 8) * 8                  # sublane-aligned accumulator rows
    patches = jnp.pad(patches, ((0, m_pad - m), (0, 0))).astype(jnp.bfloat16)

    # 0/1 pooling matrix mapping flat patch rows -> batch rows (exact in bf16);
    # the 1/196 scale is applied once in the kernel finalize.
    row = jnp.arange(m_pad)
    pool = ((row[None, :] // NPATCHES) == jnp.arange(b_pad)[:, None]) \
        & (row[None, :] < m)
    pool = pool.astype(jnp.bfloat16)

    # Batch-invariant text normalization precomputed once in the wrapper.
    tnorm = jnp.sqrt(jnp.sum(text_embed * text_embed, axis=-1, keepdims=True))
    text_unit = (text_embed / jnp.maximum(tnorm, EPS)).astype(jnp.float32)

    w_patch_bf = w_patch.astype(jnp.bfloat16)
    w_proj_bf = w_proj.astype(jnp.bfloat16)

    num_m = m_pad // TM
    out = pl.pallas_call(
        _make_fused_kernel(b),
        out_shape=jax.ShapeDtypeStruct((1, 1), jnp.float32),
        grid_spec=pltpu.PrefetchScalarGridSpec(
            num_scalar_prefetch=0,
            grid=(num_m,),
            in_specs=[
                pl.BlockSpec((TM, k), lambda i: (i, 0)),            # patches tile
                pl.BlockSpec((b_pad, TM), lambda i: (0, i)),        # pooling tile
                pl.BlockSpec((k, EMBED_DIM), lambda i: (0, 0)),     # w_patch (resident)
                pl.BlockSpec((EMBED_DIM, PROJ_DIM), lambda i: (0, 0)),
                pl.BlockSpec((1, PROJ_DIM), lambda i: (0, 0)),
            ],
            out_specs=pl.BlockSpec(memory_space=pltpu.MemorySpace.SMEM),
            scratch_shapes=[pltpu.VMEM((b_pad, EMBED_DIM), jnp.float32)],
        ),
        compiler_params=pltpu.CompilerParams(
            dimension_semantics=("arbitrary",)),   # M axis carries the pooled reduction
    )(patches, pool, w_patch_bf, w_proj_bf, text_unit)
    return out[0, 0]


if __name__ == "__main__":
    key = jax.random.PRNGKey(0)
    k_img, k_txt, k_wp, k_wj = jax.random.split(key, 4)

    B, C, H, W = 2, 3, 16, 16
    gen_image = jax.random.uniform(k_img, (B, C, H, W), dtype=jnp.float32,
                                   minval=-0.2, maxval=1.2)

    # deterministic synthetic parameters
    text_embed = jax.random.normal(k_txt, (1, PROJ_DIM), dtype=jnp.float32)
    w_patch = jax.random.normal(k_wp, (C * PATCH * PATCH, EMBED_DIM),
                                dtype=jnp.float32) * 0.02
    w_proj = jax.random.normal(k_wj, (EMBED_DIM, PROJ_DIM),
                               dtype=jnp.float32) * 0.02

    fwd = jax.jit(cosine_loss_forward)
    loss = fwd(gen_image, w_patch, w_proj, text_embed)
    jax.block_until_ready(loss)
    assert loss.shape == () and jnp.isfinite(loss)
    print("KERNEL_OK")
</pallas_src>

<mosaic_0001>
module attributes {stable_mosaic.version = 11 : i64} {
  func.func @kernel(%arg0: i32, %arg1: memref<128x768xbf16, #tpu.memory_space<vmem>>, %arg2: memref<8x128xbf16, #tpu.memory_space<vmem>>, %arg3: memref<768x256xbf16, #tpu.memory_space<vmem>>, %arg4: memref<256x128xbf16, #tpu.memory_space<vmem>>, %arg5: memref<1x128xf32, #tpu.memory_space<vmem>>, %arg6: memref<1x1xf32, #tpu.memory_space<smem>>, %arg7: memref<8x256xf32, #tpu.memory_space<vmem>>) attributes {dimension_semantics = [#tpu.dimension_semantics<arbitrary>], iteration_bounds = array<i64: 4>, scalar_prefetch = 0 : i64, scratch_operands = 1 : i64, tpu.core_type = #tpu.core_type<tc>, window_params = [{transform_indices = @transform_0, window_bounds = array<i64: 128, 768>}, {transform_indices = @transform_1, window_bounds = array<i64: 8, 128>}, {pipeline_mode = #tpu.pipeline_mode<synchronous>, transform_indices = @transform_2, window_bounds = array<i64: 768, 256>}, {pipeline_mode = #tpu.pipeline_mode<synchronous>, transform_indices = @transform_3, window_bounds = array<i64: 256, 128>}, {pipeline_mode = #tpu.pipeline_mode<synchronous>, transform_indices = @transform_4, window_bounds = array<i64: 1, 128>}, {transform_indices = @transform_5, window_bounds = array<i64: 1, 1>}]} {
    %c0_i32 = arith.constant 0 : i32
    %0 = arith.cmpi eq, %arg0, %c0_i32 : i32
    %1 = arith.extui %0 : i1 to i32
    %c0_i32_0 = arith.constant 0 : i32
    %2 = arith.cmpi ne, %1, %c0_i32_0 : i32
    scf.if %2 {
      %cst_12 = arith.constant 0.000000e+00 : f32
      %15 = vector.broadcast %cst_12 : f32 to vector<8x256xf32>
      %c0_13 = arith.constant 0 : index
      %c0_14 = arith.constant 0 : index
      %16 = vector.load %arg7[%c0_13, %c0_14] : memref<8x256xf32, #tpu.memory_space<vmem>>, vector<8x256xf32>
      tpu.vector_store %arg7[%c0_13, %c0_14], %15 {strides = array<i32>} : memref<8x256xf32, #tpu.memory_space<vmem>>, vector<8x256xf32>,
    } else {
    }
    %c0 = arith.constant 0 : index
    %c0_1 = arith.constant 0 : index
    %3 = vector.load %arg1[%c0, %c0_1] : memref<128x768xbf16, #tpu.memory_space<vmem>>, vector<128x768xbf16>
    %c0_2 = arith.constant 0 : index
    %c0_3 = arith.constant 0 : index
    %4 = vector.load %arg3[%c0_2, %c0_3] : memref<768x256xbf16, #tpu.memory_space<vmem>>, vector<768x256xbf16>
    %cst = arith.constant dense<0.000000e+00> : vector<128x256xf32>
    %5 = tpu.matmul %3, %4, %cst {dimension_numbers = #tpu.dot_dimension_numbers<[1], [0], [0], [1], [0, 0, 1, 1], [], []>} : vector<128x768xbf16>, vector<768x256xbf16>, vector<128x256xf32> -> vector<128x256xf32>
    %c0_4 = arith.constant 0 : index
    %c0_5 = arith.constant 0 : index
    %6 = vector.load %arg7[%c0_4, %c0_5] : memref<8x256xf32, #tpu.memory_space<vmem>>, vector<8x256xf32>
    %c0_6 = arith.constant 0 : index
    %c0_7 = arith.constant 0 : index
    %7 = vector.load %arg2[%c0_6, %c0_7] : memref<8x128xbf16, #tpu.memory_space<vmem>>, vector<8x128xbf16>
    %8 = arith.truncf %5 : vector<128x256xf32> to vector<128x256xbf16>
    %cst_8 = arith.constant dense<0.000000e+00> : vector<8x256xf32>
    %9 = tpu.matmul %7, %8, %cst_8 {dimension_numbers = #tpu.dot_dimension_numbers<[1], [0], [0], [1], [0, 0, 1, 1], [], []>} : vector<8x128xbf16>, vector<128x256xbf16>, vector<8x256xf32> -> vector<8x256xf32>
    %10 = arith.addf %6, %9 : vector<8x256xf32>
    %c0_9 = arith.constant 0 : index
    %c0_10 = arith.constant 0 : index
    %11 = vector.load %arg7[%c0_9, %c0_10] : memref<8x256xf32, #tpu.memory_space<vmem>>, vector<8x256xf32>
    tpu.vector_store %arg7[%c0_9, %c0_10], %10 {strides = array<i32>} : memref<8x256xf32, #tpu.memory_space<vmem>>, vector<8x256xf32>,
    %c3_i32 = arith.constant 3 : i32
    %12 = arith.cmpi eq, %arg0, %c3_i32 : i32
    %13 = arith.extui %12 : i1 to i32
    %c0_i32_11 = arith.constant 0 : i32
    %14 = arith.cmpi ne, %13, %c0_i32_11 : i32
    scf.if %14 {
      %c0_12 = arith.constant 0 : index
      %c0_13 = arith.constant 0 : index
      %15 = vector.load %arg7[%c0_12, %c0_13] : memref<8x256xf32, #tpu.memory_space<vmem>>, vector<8x256xf32>
      %cst_14 = arith.constant 0.00510204071 : f32
      %16 = vector.broadcast %cst_14 : f32 to vector<8x256xf32>
      %17 = arith.mulf %15, %16 : vector<8x256xf32>
      %18 = arith.truncf %17 : vector<8x256xf32> to vector<8x256xbf16>
      %c0_15 = arith.constant 0 : index
      %c0_16 = arith.constant 0 : index
      %19 = vector.load %arg4[%c0_15, %c0_16] : memref<256x128xbf16, #tpu.memory_space<vmem>>, vector<256x128xbf16>
      %cst_17 = arith.constant dense<0.000000e+00> : vector<8x128xf32>
      %20 = tpu.matmul %18, %19, %cst_17 {dimension_numbers = #tpu.dot_dimension_numbers<[1], [0], [0], [1], [0, 0, 1, 1], [], []>} : vector<8x256xbf16>, vector<256x128xbf16>, vector<8x128xf32> -> vector<8x128xf32>
      %c0_18 = arith.constant 0 : index
      %c0_19 = arith.constant 0 : index
      %21 = vector.load %arg5[%c0_18, %c0_19] : memref<1x128xf32, #tpu.memory_space<vmem>>, vector<1x128xf32>
      %22 = vector.broadcast %21 : vector<1x128xf32> to vector<8x128xf32>
      %23 = arith.mulf %20, %22 : vector<8x128xf32>
      %cst_20 = arith.constant dense<0.000000e+00> : vector<8xf32>
      %24 = vector.multi_reduction <add>, %23, %cst_20 [1] : vector<8x128xf32> to vector<8xf32>
      %25 = vector.shape_cast %24 : vector<8xf32> to vector<8x1xf32>
      %26 = arith.mulf %20, %20 : vector<8x128xf32>
      %cst_21 = arith.constant dense<0.000000e+00> : vector<8xf32>
      %27 = vector.multi_reduction <add>, %26, %cst_21 [1] : vector<8x128xf32> to vector<8xf32>
      %28 = vector.shape_cast %27 : vector<8xf32> to vector<8x1xf32>
      %cst_22 = arith.constant 1.000000e-16 : f32
      %29 = vector.broadcast %cst_22 : f32 to vector<8x1xf32>
      %30 = arith.maximumf %28, %29 : vector<8x1xf32>
      %31 = math.rsqrt %30 : vector<8x1xf32>
      %32 = arith.mulf %25, %31 : vector<8x1xf32>
      %33 = vector.shape_cast %32 : vector<8x1xf32> to vector<1x8x1xf32>
      %cst_23 = arith.constant dense<0.000000e+00> : vector<1xf32>
      %34 = vector.multi_reduction <add>, %33, %cst_23 [1, 2] : vector<1x8x1xf32> to vector<1xf32>
      %35 = vector.shape_cast %34 : vector<1xf32> to vector<1x1x1xf32>
      %36 = vector.extract %35[0, 0, 0] : f32 from vector<1x1x1xf32>
      %cst_24 = arith.constant 5.000000e-01 : f32
      %37 = arith.mulf %36, %cst_24 : f32
      %cst_25 = arith.constant 1.000000e+00 : f32
      %38 = arith.subf %cst_25, %37 : f32
      %c0_26 = arith.constant 0 : index
      %c0_27 = arith.constant 0 : index
      %39 = memref.load %arg6[%c0_26, %c0_27] : memref<1x1xf32, #tpu.memory_space<smem>>
      memref.store %38, %arg6[%c0_26, %c0_27] : memref<1x1xf32, #tpu.memory_space<smem>>
    } else {
    }
    return
  }
  func.func @transform_0(%arg0: i32) -> (i32, i32) {
    %c0_i32 = arith.constant 0 : i32
    %c0_i32_0 = arith.constant 0 : i32
    return %arg0, %c0_i32 : i32, i32
  }
  func.func @transform_1(%arg0: i32) -> (i32, i32) {
    %c0_i32 = arith.constant 0 : i32
    %c0_i32_0 = arith.constant 0 : i32
    return %c0_i32, %arg0 : i32, i32
  }
  func.func @transform_2(%arg0: i32) -> (i32, i32) {
    %c0_i32 = arith.constant 0 : i32
    %c0_i32_0 = arith.constant 0 : i32
    %c0_i32_1 = arith.constant 0 : i32
    return %c0_i32, %c0_i32_0 : i32, i32
  }
  func.func @transform_3(%arg0: i32) -> (i32, i32) {
    %c0_i32 = arith.constant 0 : i32
    %c0_i32_0 = arith.constant 0 : i32
    %c0_i32_1 = arith.constant 0 : i32
    return %c0_i32, %c0_i32_0 : i32, i32
  }
  func.func @transform_4(%arg0: i32) -> (i32, i32) {
    %c0_i32 = arith.constant 0 : i32
    %c0_i32_0 = arith.constant 0 : i32
    %c0_i32_1 = arith.constant 0 : i32
    return %c0_i32, %c0_i32_0 : i32, i32
  }
  func.func @transform_5(%arg0: i32) -> (i32, i32) {
    %c0_i32 = arith.constant 0 : i32
    %c0_i32_0 = arith.constant 0 : i32
    %c0_i32_1 = arith.constant 0 : i32
    return %c0_i32, %c0_i32_0 : i32, i32
  }
}

</mosaic_0001>

<llo_original>
// kernel: cosine_loss_forward.1
$region0: #{cosine_loss_forward.1}
  #allocation0 [shape = 'u32[]', space=smem, size = 0x4, offset = 0x4, fixed_abs, tag = 'smem constant byte address 0x4 - core index']
  #allocation1 [shape = 'u32[144,128]{1,0:T(1,128)}', space=vmem, size = 0x12000, scoped, tag = 'internal scratch']
  #allocation2 [shape = 'f32[8,256]{1,0:T(8,128)}', space=vmem, size = 0x2000, scoped, tag = 'scratch operand']
  %s0 = inlined_call_operand.vmem [shape: bf16[512,768], index: 0, kind: input, shape index: {}]
  %s1 = inlined_call_operand.vmem [shape: bf16[8,512], index: 1, kind: input, shape index: {}]
  %s2 = inlined_call_operand.vmem [shape: bf16[768,256], index: 2, kind: input, shape index: {}]
  %s3 = inlined_call_operand.vmem [shape: bf16[256,128], index: 3, kind: input, shape index: {}]
  %s4 = inlined_call_operand.vmem [shape: f32[1,128], index: 4, kind: input, shape index: {}]
  %s5 = inlined_call_operand.hbm [shape: f32[1,1], index: 5, kind: output, shape index: {}]
  %s6 = sld [smem:[#allocation0]]
  $region61: #{cosine_loss_forward.1} parent=0
    _
  %s8 = ssub.s32 1, %s6
  %s9 = scalar_select 0, %s8, %s6
  $region1: #{cosine_loss_forward.1} parent=0
    #allocation3 [shape = 'u8[512]{0}', space=smem, size = 0x200, scoped, tag = 'output window, operand 0, single buffered']
    #allocation4 [shape = 's32[2]{0}', space=sflag, size = 0x8, scoped, tag = 'scoped memory for cosine_loss_forward.1']
    %10 = vsyncpa [#allocation4], 0
    loop: start=0, step=1, limit=6
    $region2: #{cosine_loss_forward.1} parent=1 // loop_pre_header
      _
    $region3: #{cosine_loss_forward.1} parent=1 // loop_header
      %s12 = sphi 0, %s16
      %p13 = scmp.ge.s32.totalorder %s12, 6
      %s22 = sphi 0, %s24
      %s25 = sphi 0, %s22
      %s26 = sphi 0, %s25
      %s42 = sphi 0, %s26
      %s48 = sphi 0, %s50
      %s51 = sphi 0, %s48
      %s52 = sphi 0, %s51
      %s68 = sphi 0, %s52
      %s72 = sphi 0, %s72
      %s74 = sphi 0, %s72
      %s75 = sphi 0, %s74
      %s89 = sphi 0, %s75
      %s93 = sphi 0, %s93
      %s95 = sphi 0, %s93
      %s96 = sphi 0, %s95
      %s110 = sphi 0, %s96
      %s114 = sphi 0, %s114
      %s116 = sphi 0, %s114
      %s117 = sphi 0, %s116
      %s131 = sphi 0, %s117
      %s135 = sphi 0, %s135
      %s137 = sphi 0, %s135
      %s138 = sphi 0, %s137
      %s152 = sphi 0, %s138
    $region4: #{cosine_loss_forward.1} parent=1 // loop_header_branch
      %15 = sbr.rel (%p13) target = $region8
    $region5: #{cosine_loss_forward.1} parent=1 // loop_body
      %s17 = ssub.s32 %s12, 1
      %s18 = ssub.s32 %s12, 2
      %s19 = sadd.s32 %s12, 1
      %s20 = ssub.s32 %s12, %s19
      %p21 = scmp.eq.s32.totalorder %s20, 0
      %s23 = sadd.s32 %s22, 1
      %s24 = scalar_select %p21, %s22, %s23
      %p27 = pneg %p21
      %p28 = scmp.eq.s32.totalorder %s12, 3
      %p29 = por %p27, %p28
      %p30 = scmp.ne.s32.totalorder %s22, %s25
      %p31 = scmp.eq.s32.totalorder %s12, 0
      %p32 = por %p30, %p31
      %p33 = scmp.ne.s32.totalorder %s22, %s25
      %p34 = scmp.eq.s32.totalorder %s17, 3
      %p35 = por %p33, %p34
      %p36 = scmp.ne.s32.totalorder %s25, %s26
      %p37 = scmp.eq.s32.totalorder %s17, 0
      %p38 = por %p36, %p37
      %p39 = scmp.ne.s32.totalorder %s25, %s26
      %p40 = scmp.eq.s32.totalorder %s18, 3
      %p41 = por %p39, %p40
      %p43 = scmp.ne.s32.totalorder %s26, %s42
      %p44 = scmp.eq.s32.totalorder %s18, 0
      %p45 = por %p43, %p44
      %s46 = ssub.s32 %s12, %s19
      %p47 = scmp.eq.s32.totalorder %s46, 0
      %s49 = sadd.s32 %s48, 1
      %s50 = scalar_select %p47, %s48, %s49
      %p53 = pneg %p47
      %p54 = scmp.eq.s32.totalorder %s12, 3
      %p55 = por %p53, %p54
      %p56 = scmp.ne.s32.totalorder %s48, %s51
      %p57 = scmp.eq.s32.totalorder %s12, 0
      %p58 = por %p56, %p57
      %p59 = scmp.ne.s32.totalorder %s48, %s51
      %p60 = scmp.eq.s32.totalorder %s17, 3
      %p61 = por %p59, %p60
      %p62 = scmp.ne.s32.totalorder %s51, %s52
      %p63 = scmp.eq.s32.totalorder %s17, 0
      %p64 = por %p62, %p63
      %p65 = scmp.ne.s32.totalorder %s51, %s52
      %p66 = scmp.eq.s32.totalorder %s18, 3
      %p67 = por %p65, %p66
      %p69 = scmp.ne.s32.totalorder %s52, %s68
      %p70 = scmp.eq.s32.totalorder %s18, 0
      %p71 = por %p69, %p70
      %s73 = sadd.s32 %s72, 1
      %p76 = scmp.eq.s32.totalorder %s12, 3
      %p77 = scmp.ne.s32.totalorder %s72, %s74
      %p78 = scmp.eq.s32.totalorder %s12, 0
      %p79 = por %p77, %p78
      %p80 = scmp.ne.s32.totalorder %s72, %s74
      %p81 = scmp.eq.s32.totalorder %s17, 3
      %p82 = por %p80, %p81
      %p83 = scmp.ne.s32.totalorder %s74, %s75
      %p84 = scmp.eq.s32.totalorder %s17, 0
      %p85 = por %p83, %p84
      %p86 = scmp.ne.s32.totalorder %s74, %s75
      %p87 = scmp.eq.s32.totalorder %s18, 3
      %p88 = por %p86, %p87
      %p90 = scmp.ne.s32.totalorder %s75, %s89
      %p91 = scmp.eq.s32.totalorder %s18, 0
      %p92 = por %p90, %p91
      %s94 = sadd.s32 %s93, 1
      %p97 = scmp.eq.s32.totalorder %s12, 3
      %p98 = scmp.ne.s32.totalorder %s93, %s95
      %p99 = scmp.eq.s32.totalorder %s12, 0
      %p100 = por %p98, %p99
      %p101 = scmp.ne.s32.totalorder %s93, %s95
      %p102 = scmp.eq.s32.totalorder %s17, 3
      %p103 = por %p101, %p102
      %p104 = scmp.ne.s32.totalorder %s95, %s96
      %p105 = scmp.eq.s32.totalorder %s17, 0
      %p106 = por %p104, %p105
      %p107 = scmp.ne.s32.totalorder %s95, %s96
      %p108 = scmp.eq.s32.totalorder %s18, 3
      %p109 = por %p107, %p108
      %p111 = scmp.ne.s32.totalorder %s96, %s110
      %p112 = scmp.eq.s32.totalorder %s18, 0
      %p113 = por %p111, %p112
      %s115 = sadd.s32 %s114, 1
      %p118 = scmp.eq.s32.totalorder %s12, 3
      %p119 = scmp.ne.s32.totalorder %s114, %s116
      %p120 = scmp.eq.s32.totalorder %s12, 0
      %p121 = por %p119, %p120
      %p122 = scmp.ne.s32.totalorder %s114, %s116
      %p123 = scmp.eq.s32.totalorder %s17, 3
      %p124 = por %p122, %p123
      %p125 = scmp.ne.s32.totalorder %s116, %s117
      %p126 = scmp.eq.s32.totalorder %s17, 0
      %p127 = por %p125, %p126
      %p128 = scmp.ne.s32.totalorder %s116, %s117
      %p129 = scmp.eq.s32.totalorder %s18, 3
      %p130 = por %p128, %p129
      %p132 = scmp.ne.s32.totalorder %s117, %s131
      %p133 = scmp.eq.s32.totalorder %s18, 0
      %p134 = por %p132, %p133
      %s136 = sadd.s32 %s135, 1
      %p139 = scmp.eq.s32.totalorder %s12, 3
      %p140 = scmp.ne.s32.totalorder %s135, %s137
      %p141 = scmp.eq.s32.totalorder %s12, 0
      %p142 = por %p140, %p141
      %p143 = scmp.ne.s32.totalorder %s135, %s137
      %p144 = scmp.eq.s32.totalorder %s17, 3
      %p145 = por %p143, %p144
      %p146 = scmp.ne.s32.totalorder %s137, %s138
      %p147 = scmp.eq.s32.totalorder %s17, 0
      %p148 = por %p146, %p147
      %p149 = scmp.ne.s32.totalorder %s137, %s138
      %p150 = scmp.eq.s32.totalorder %s18, 3
      %p151 = por %p149, %p150
      %p153 = scmp.ne.s32.totalorder %s138, %s152
      %p154 = scmp.eq.s32.totalorder %s18, 0
      %p155 = por %p153, %p154
      %p156 = scmp.le.s32.totalorder 1, %s12
      %p157 = scmp.lt.s32.totalorder %s12, 5
      %p158 = pnand %p156, %p157
      %p159 = pneg %p158
      // Predicated region
      $region9: #{cosine_loss_forward.1} parent=5 // pred_check
        _
      $region10: #{cosine_loss_forward.1} parent=5 // pred_check_branch
        %161 = sbr.rel (%p158) target = $region12
      $region11: #{cosine_loss_forward.1} parent=5 // pred_region
        %s162 = ssub.s32 %s12, 1
        // Predicated region
        $region13: #{cosine_loss_forward.1} parent=11 // pred_check
          %p163 = pneg %p85
        $region14: #{cosine_loss_forward.1} parent=11 // pred_check_branch
          %165 = sbr.rel (%p163) target = $region16
        $region15: #{cosine_loss_forward.1} parent=11 // pred_region
          _
        $region16: #{cosine_loss_forward.1} parent=11 // pred_fallthru
          _
        // Predicated region
        $region17: #{cosine_loss_forward.1} parent=11 // pred_check
          %p166 = pneg %p106
        $region18: #{cosine_loss_forward.1} parent=11 // pred_check_branch
          %168 = sbr.rel (%p166) target = $region20
        $region19: #{cosine_loss_forward.1} parent=11 // pred_region
          _
        $region20: #{cosine_loss_forward.1} parent=11 // pred_fallthru
          _
        // Predicated region
        $region21: #{cosine_loss_forward.1} parent=11 // pred_check
          %p169 = pneg %p127
        $region22: #{cosine_loss_forward.1} parent=11 // pred_check_branch
          %171 = sbr.rel (%p169) target = $region24
        $region23: #{cosine_loss_forward.1} parent=11 // pred_region
          _
        $region24: #{cosine_loss_forward.1} parent=11 // pred_fallthru
          _
      $region12: #{cosine_loss_forward.1} parent=5 // pred_fallthru
        _
      %p172 = scmp.lt.s32.totalorder %s12, 4
      // Predicated region
      $region25: #{cosine_loss_forward.1} parent=5 // pred_check
        %p173 = pneg %p172
      $region26: #{cosine_loss_forward.1} parent=5 // pred_check_branch
        %175 = sbr.rel (%p173) target = $region28
      $region27: #{cosine_loss_forward.1} parent=5 // pred_region
        // Predicated region
        $region29: #{cosine_loss_forward.1} parent=27 // pred_check
          %p176 = pneg %p32
        $region30: #{cosine_loss_forward.1} parent=27 // pred_check_branch
          %178 = sbr.rel (%p176) target = $region32
        $region31: #{cosine_loss_forward.1} parent=27 // pred_region
          %s179 = smul.u32 16, %s12
          %p180 = scmp.lt.s32.totalorder %s179, 63
          %s181 = scalar_select %p180, %s179, 63
          %s182 = smul.addr %s181, 6
          %s183 = smul.addr %s182, 4
          %s184 = scalar_lea.vmem %s0, %s183
          %s185 = smul.u32 16, %s12
        $region32: #{cosine_loss_forward.1} parent=27 // pred_fallthru
          _
        // Predicated region
        $region33: #{cosine_loss_forward.1} parent=27 // pred_check
          %p186 = pneg %p58
        $region34: #{cosine_loss_forward.1} parent=27 // pred_check_branch
          %188 = sbr.rel (%p186) target = $region36
        $region35: #{cosine_loss_forward.1} parent=27 // pred_region
          %p189 = scmp.lt.s32.totalorder %s12, 3
          %s190 = scalar_select %p189, %s12, 3
          %s191 = smul.addr %s190, 4
          %s192 = scalar_lea.vmem %s1, %s191
        $region36: #{cosine_loss_forward.1} parent=27 // pred_fallthru
          _
      $region28: #{cosine_loss_forward.1} parent=5 // pred_fallthru
        _
      %p193 = scmp.le.s32.totalorder 1, %s12
      %p194 = scmp.lt.s32.totalorder %s12, 5
      %p195 = pnand %p193, %p194
      %p196 = pneg %p195
      // Predicated region
      $region37: #{cosine_loss_forward.1} parent=5 // pred_check
        _
      $region38: #{cosine_loss_forward.1} parent=5 // pred_check_branch
        %198 = sbr.rel (%p195) target = $region40
      $region39: #{cosine_loss_forward.1} parent=5 // pred_region
        %s199 = ssub.s32 %s12, 1
        %s200 = smul.u32 16, %s17
        %p201 = scmp.lt.s32.totalorder %s200, 63
        %s202 = scalar_select %p201, %s200, 63
        %s203 = smul.addr %s202, 6
        %s204 = smul.addr %s203, 4
        %s205 = scalar_lea.vmem %s0, %s204
        %p206 = pneg %p38
        %p207 = pneg %p35
        %p208 = scmp.lt.s32.totalorder %s17, 3
        %s209 = scalar_select %p208, %s17, 3
        %s210 = smul.addr %s209, 4
        %s211 = scalar_lea.vmem %s1, %s210
        %p212 = pneg %p64
        %p213 = pneg %p61
        %p214 = pneg %p85
        %p215 = pneg %p82
        %p216 = pneg %p106
        %p217 = pneg %p103
        %p218 = pneg %p127
        %p219 = pneg %p124
        %p220 = pneg %p148
        %p221 = pneg %p145
        %s222 = smul.u32 16, %s17
        %p223 = scmp.lt.s32.totalorder %s222, 63
        %s224 = scalar_select %p223, %s222, 63
        %s225 = smul.addr %s224, 6
        %s226 = smul.addr %s225, 4
        %s227 = scalar_lea.vmem %s0, %s226
        %s228 = smul.u32 16, %s17
        %p229 = scmp.lt.s32.totalorder %s17, 3
        %s230 = scalar_select %p229, %s17, 3
        %s231 = smul.addr %s230, 4
        %s232 = scalar_lea.vmem %s1, %s231
        %p234 = scmp.eq.s32.totalorder %s17, 0
        // Predicated region
        $region41: #{cosine_loss_forward.1} parent=39 // pred_check
          %p235 = pneg %p234
        $region42: #{cosine_loss_forward.1} parent=39 // pred_check_branch
          %237 = sbr.rel (%p235) target = $region44
        $region43: #{cosine_loss_forward.1} parent=39 // pred_region
          %238 = vst [vmem:[#allocation2] sm:$0xff] 0.0
          %239 = vst [vmem:[#allocation2 + $0x8] sm:$0xff] 0.0
        $region44: #{cosine_loss_forward.1} parent=39 // pred_fallthru
          _
        %v240 = vld [vmem:[%s227] sm:$0xff]
        %v241 = vld [vmem:[%s227 + $0x8] sm:$0xff]
        %v242 = vld [vmem:[%s227 + $0x10] sm:$0xff]
        %v243 = vld [vmem:[%s227 + $0x18] sm:$0xff]
        %v244 = vld [vmem:[%s227 + $0x20] sm:$0xff]
        %v245 = vld [vmem:[%s227 + $0x28] sm:$0xff]
        %v246 = vld [vmem:[%s227 + $0x30] sm:$0xff]
        %v247 = vld [vmem:[%s227 + $0x38] sm:$0xff]
        %v248 = vld [vmem:[%s227 + $0x40] sm:$0xff]
        %v249 = vld [vmem:[%s227 + $0x48] sm:$0xff]
        %v250 = vld [vmem:[%s227 + $0x50] sm:$0xff]
        %v251 = vld [vmem:[%s227 + $0x58] sm:$0xff]
        %v252 = vld [vmem:[%s227 + $0x60] sm:$0xff]
        %v253 = vld [vmem:[%s227 + $0x68] sm:$0xff]
        %v254 = vld [vmem:[%s227 + $0x70] sm:$0xff]
        %v255 = vld [vmem:[%s227 + $0x78] sm:$0xff]
        %v256 = vld [vmem:[%s227 + $0x80] sm:$0xff]
        %v257 = vld [vmem:[%s227 + $0x88] sm:$0xff]
        %v258 = vld [vmem:[%s227 + $0x90] sm:$0xff]
        %v259 = vld [vmem:[%s227 + $0x98] sm:$0xff]
        %v260 = vld [vmem:[%s227 + $0xa0] sm:$0xff]
        %v261 = vld [vmem:[%s227 + $0xa8] sm:$0xff]
        %v262 = vld [vmem:[%s227 + $0xb0] sm:$0xff]
        %v263 = vld [vmem:[%s227 + $0xb8] sm:$0xff]
        %v264 = vld [vmem:[%s227 + $0xc0] sm:$0xff]
        %v265 = vld [vmem:[%s227 + $0xc8] sm:$0xff]
        %v266 = vld [vmem:[%s227 + $0xd0] sm:$0xff]
        %v267 = vld [vmem:[%s227 + $0xd8] sm:$0xff]
        %v268 = vld [vmem:[%s227 + $0xe0] sm:$0xff]
        %v269 = vld [vmem:[%s227 + $0xe8] sm:$0xff]
        %v270 = vld [vmem:[%s227 + $0xf0] sm:$0xff]
        %v271 = vld [vmem:[%s227 + $0xf8] sm:$0xff]
        %v272 = vld [vmem:[%s227 + $0x100] sm:$0xff]
        %v273 = vld [vmem:[%s227 + $0x108] sm:$0xff]
        %v274 = vld [vmem:[%s227 + $0x110] sm:$0xff]
        %v275 = vld [vmem:[%s227 + $0x118] sm:$0xff]
        %v276 = vld [vmem:[%s227 + $0x120] sm:$0xff]
        %v277 = vld [vmem:[%s227 + $0x128] sm:$0xff]
        %v278 = vld [vmem:[%s227 + $0x130] sm:$0xff]
        %v279 = vld [vmem:[%s227 + $0x138] sm:$0xff]
        %v280 = vld [vmem:[%s227 + $0x140] sm:$0xff]
        %v281 = vld [vmem:[%s227 + $0x148] sm:$0xff]
        %v282 = vld [vmem:[%s227 + $0x150] sm:$0xff]
        %v283 = vld [vmem:[%s227 + $0x158] sm:$0xff]
        %v284 = vld [vmem:[%s227 + $0x160] sm:$0xff]
        %v285 = vld [vmem:[%s227 + $0x168] sm:$0xff]
        %v286 = vld [vmem:[%s227 + $0x170] sm:$0xff]
        %v287 = vld [vmem:[%s227 + $0x178] sm:$0xff]
        %v288 = vld [vmem:[%s2] sm:$0xff]
        %v289 = vld [vmem:[%s2 + $0x8] sm:$0xff]
        %v290 = vld [vmem:[%s2 + $0x10] sm:$0xff]
        %v291 = vld [vmem:[%s2 + $0x18] sm:$0xff]
        %v292 = vld [vmem:[%s2 + $0x20] sm:$0xff]
        %v293 = vld [vmem:[%s2 + $0x28] sm:$0xff]
        %v294 = vld [vmem:[%s2 + $0x30] sm:$0xff]
        %v295 = vld [vmem:[%s2 + $0x38] sm:$0xff]
        %v296 = vld [vmem:[%s2 + $0x40] sm:$0xff]
        %v297 = vld [vmem:[%s2 + $0x48] sm:$0xff]
        %v298 = vld [vmem:[%s2 + $0x50] sm:$0xff]
        %v299 = vld [vmem:[%s2 + $0x58] sm:$0xff]
        %v300 = vld [vmem:[%s2 + $0x60] sm:$0xff]
        %v301 = vld [vmem:[%s2 + $0x68] sm:$0xff]
        %v302 = vld [vmem:[%s2 + $0x70] sm:$0xff]
        %v303 = vld [vmem:[%s2 + $0x78] sm:$0xff]
        %v304 = vld [vmem:[%s2 + $0x80] sm:$0xff]
        %v305 = vld [vmem:[%s2 + $0x88] sm:$0xff]
        %v306 = vld [vmem:[%s2 + $0x90] sm:$0xff]
        %v307 = vld [vmem:[%s2 + $0x98] sm:$0xff]
        %v308 = vld [vmem:[%s2 + $0xa0] sm:$0xff]
        %v309 = vld [vmem:[%s2 + $0xa8] sm:$0xff]
        %v310 = vld [vmem:[%s2 + $0xb0] sm:$0xff]
        %v311 = vld [vmem:[%s2 + $0xb8] sm:$0xff]
        %v312 = vld [vmem:[%s2 + $0xc0] sm:$0xff]
        %v313 = vld [vmem:[%s2 + $0xc8] sm:$0xff]
        %v314 = vld [vmem:[%s2 + $0xd0] sm:$0xff]
        %v315 = vld [vmem:[%s2 + $0xd8] sm:$0xff]
        %v316 = vld [vmem:[%s2 + $0xe0] sm:$0xff]
        %v317 = vld [vmem:[%s2 + $0xe8] sm:$0xff]
        %v318 = vld [vmem:[%s2 + $0xf0] sm:$0xff]
        %v319 = vld [vmem:[%s2 + $0xf8] sm:$0xff]
        %v320 = vld [vmem:[%s2 + $0x100] sm:$0xff]
        %v321 = vld [vmem:[%s2 + $0x108] sm:$0xff]
        %v322 = vld [vmem:[%s2 + $0x110] sm:$0xff]
        %v323 = vld [vmem:[%s2 + $0x118] sm:$0xff]
        %v324 = vld [vmem:[%s2 + $0x120] sm:$0xff]
        %v325 = vld [vmem:[%s2 + $0x128] sm:$0xff]
        %v326 = vld [vmem:[%s2 + $0x130] sm:$0xff]
        %v327 = vld [vmem:[%s2 + $0x138] sm:$0xff]
        %v328 = vld [vmem:[%s2 + $0x140] sm:$0xff]
        %v329 = vld [vmem:[%s2 + $0x148] sm:$0xff]
        %v330 = vld [vmem:[%s2 + $0x150] sm:$0xff]
        %v331 = vld [vmem:[%s2 + $0x158] sm:$0xff]
        %v332 = vld [vmem:[%s2 + $0x160] sm:$0xff]
        %v333 = vld [vmem:[%s2 + $0x168] sm:$0xff]
        %v334 = vld [vmem:[%s2 + $0x170] sm:$0xff]
        %v335 = vld [vmem:[%s2 + $0x178] sm:$0xff]
        %v336 = vld [vmem:[%s2 + $0x180] sm:$0xff]
        %v337 = vld [vmem:[%s2 + $0x188] sm:$0xff]
        %v338 = vld [vmem:[%s2 + $0x190] sm:$0xff]
        %v339 = vld [vmem:[%s2 + $0x198] sm:$0xff]
        %v340 = vld [vmem:[%s2 + $0x1a0] sm:$0xff]
        %v341 = vld [vmem:[%s2 + $0x1a8] sm:$0xff]
        %v342 = vld [vmem:[%s2 + $0x1b0] sm:$0xff]
        %v343 = vld [vmem:[%s2 + $0x1b8] sm:$0xff]
        %v344 = vld [vmem:[%s2 + $0x1c0] sm:$0xff]
        %v345 = vld [vmem:[%s2 + $0x1c8] sm:$0xff]
        %v346 = vld [vmem:[%s2 + $0x1d0] sm:$0xff]
        %v347 = vld [vmem:[%s2 + $0x1d8] sm:$0xff]
        %v348 = vld [vmem:[%s2 + $0x1e0] sm:$0xff]
        %v349 = vld [vmem:[%s2 + $0x1e8] sm:$0xff]
        %v350 = vld [vmem:[%s2 + $0x1f0] sm:$0xff]
        %v351 = vld [vmem:[%s2 + $0x1f8] sm:$0xff]
        %v352 = vld [vmem:[%s2 + $0x200] sm:$0xff]
        %v353 = vld [vmem:[%s2 + $0x208] sm:$0xff]
        %v354 = vld [vmem:[%s2 + $0x210] sm:$0xff]
        %v355 = vld [vmem:[%s2 + $0x218] sm:$0xff]
        %v356 = vld [vmem:[%s2 + $0x220] sm:$0xff]
        %v357 = vld [vmem:[%s2 + $0x228] sm:$0xff]
        %v358 = vld [vmem:[%s2 + $0x230] sm:$0xff]
        %v359 = vld [vmem:[%s2 + $0x238] sm:$0xff]
        %v360 = vld [vmem:[%s2 + $0x240] sm:$0xff]
        %v361 = vld [vmem:[%s2 + $0x248] sm:$0xff]
        %v362 = vld [vmem:[%s2 + $0x250] sm:$0xff]
        %v363 = vld [vmem:[%s2 + $0x258] sm:$0xff]
        %v364 = vld [vmem:[%s2 + $0x260] sm:$0xff]
        %v365 = vld [vmem:[%s2 + $0x268] sm:$0xff]
        %v366 = vld [vmem:[%s2 + $0x270] sm:$0xff]
        %v367 = vld [vmem:[%s2 + $0x278] sm:$0xff]
        %v368 = vld [vmem:[%s2 + $0x280] sm:$0xff]
        %v369 = vld [vmem:[%s2 + $0x288] sm:$0xff]
        %v370 = vld [vmem:[%s2 + $0x290] sm:$0xff]
        %v371 = vld [vmem:[%s2 + $0x298] sm:$0xff]
        %v372 = vld [vmem:[%s2 + $0x2a0] sm:$0xff]
        %v373 = vld [vmem:[%s2 + $0x2a8] sm:$0xff]
        %v374 = vld [vmem:[%s2 + $0x2b0] sm:$0xff]
        %v375 = vld [vmem:[%s2 + $0x2b8] sm:$0xff]
        %v376 = vld [vmem:[%s2 + $0x2c0] sm:$0xff]
        %v377 = vld [vmem:[%s2 + $0x2c8] sm:$0xff]
        %v378 = vld [vmem:[%s2 + $0x2d0] sm:$0xff]
        %v379 = vld [vmem:[%s2 + $0x2d8] sm:$0xff]
        %v380 = vld [vmem:[%s2 + $0x2e0] sm:$0xff]
        %v381 = vld [vmem:[%s2 + $0x2e8] sm:$0xff]
        %v382 = vld [vmem:[%s2 + $0x2f0] sm:$0xff]
        %v383 = vld [vmem:[%s2 + $0x2f8] sm:$0xff]
        %v432 = vunpack.c.l.b16 %v240
        %v433 = vunpack.c.h.b16 %v240
        %v434 = vunpack.c.l.b16 %v241
        %v435 = vunpack.c.h.b16 %v241
        %v436 = vunpack.c.l.b16 %v242
        %v437 = vunpack.c.h.b16 %v242
        %v438 = vunpack.c.l.b16 %v243
        %v439 = vunpack.c.h.b16 %v243
        %v440 = vunpack.c.l.b16 %v244
        %v441 = vunpack.c.h.b16 %v244
        %v442 = vunpack.c.l.b16 %v245
        %v443 = vunpack.c.h.b16 %v245
        %v444 = vunpack.c.l.b16 %v246
        %v445 = vunpack.c.h.b16 %v246
        %v446 = vunpack.c.l.b16 %v247
        %v447 = vunpack.c.h.b16 %v247
        %v448 = vunpack.c.l.b16 %v248
        %v449 = vunpack.c.h.b16 %v248
        %v450 = vunpack.c.l.b16 %v249
        %v451 = vunpack.c.h.b16 %v249
        %v452 = vunpack.c.l.b16 %v250
        %v453 = vunpack.c.h.b16 %v250
        %v454 = vunpack.c.l.b16 %v251
        %v455 = vunpack.c.h.b16 %v251
        %v456 = vunpack.c.l.b16 %v252
        %v457 = vunpack.c.h.b16 %v252
        %v458 = vunpack.c.l.b16 %v253
        %v459 = vunpack.c.h.b16 %v253
        %v460 = vunpack.c.l.b16 %v254
        %v461 = vunpack.c.h.b16 %v254
        %v462 = vunpack.c.l.b16 %v255
        %v463 = vunpack.c.h.b16 %v255
        %v464 = vunpack.c.l.b16 %v256
        %v465 = vunpack.c.h.b16 %v256
        %v466 = vunpack.c.l.b16 %v257
        %v467 = vunpack.c.h.b16 %v257
        %v468 = vunpack.c.l.b16 %v258
        %v469 = vunpack.c.h.b16 %v258
        %v470 = vunpack.c.l.b16 %v259
        %v471 = vunpack.c.h.b16 %v259
        %v472 = vunpack.c.l.b16 %v260
        %v473 = vunpack.c.h.b16 %v260
        %v474 = vunpack.c.l.b16 %v261
        %v475 = vunpack.c.h.b16 %v261
        %v476 = vunpack.c.l.b16 %v262
        %v477 = vunpack.c.h.b16 %v262
        %v478 = vunpack.c.l.b16 %v263
        %v479 = vunpack.c.h.b16 %v263
        %v480 = vunpack.c.l.b16 %v264
        %v481 = vunpack.c.h.b16 %v264
        %v482 = vunpack.c.l.b16 %v265
        %v483 = vunpack.c.h.b16 %v265
        %v484 = vunpack.c.l.b16 %v266
        %v485 = vunpack.c.h.b16 %v266
        %v486 = vunpack.c.l.b16 %v267
        %v487 = vunpack.c.h.b16 %v267
        %v488 = vunpack.c.l.b16 %v268
        %v489 = vunpack.c.h.b16 %v268
        %v490 = vunpack.c.l.b16 %v269
        %v491 = vunpack.c.h.b16 %v269
        %v492 = vunpack.c.l.b16 %v270
        %v493 = vunpack.c.h.b16 %v270
        %v494 = vunpack.c.l.b16 %v271
        %v495 = vunpack.c.h.b16 %v271
        %v496 = vunpack.c.l.b16 %v272
        %v497 = vunpack.c.h.b16 %v272
        %v498 = vunpack.c.l.b16 %v273
        %v499 = vunpack.c.h.b16 %v273
        %v500 = vunpack.c.l.b16 %v274
        %v501 = vunpack.c.h.b16 %v274
        %v502 = vunpack.c.l.b16 %v275
        %v503 = vunpack.c.h.b16 %v275
        %v504 = vunpack.c.l.b16 %v276
        %v505 = vunpack.c.h.b16 %v276
        %v506 = vunpack.c.l.b16 %v277
        %v507 = vunpack.c.h.b16 %v277
        %v508 = vunpack.c.l.b16 %v278
        %v509 = vunpack.c.h.b16 %v278
        %v510 = vunpack.c.l.b16 %v279
        %v511 = vunpack.c.h.b16 %v279
        %v512 = vunpack.c.l.b16 %v280
        %v513 = vunpack.c.h.b16 %v280
        %v514 = vunpack.c.l.b16 %v281
        %v515 = vunpack.c.h.b16 %v281
        %v516 = vunpack.c.l.b16 %v282
        %v517 = vunpack.c.h.b16 %v282
        %v518 = vunpack.c.l.b16 %v283
        %v519 = vunpack.c.h.b16 %v283
        %v520 = vunpack.c.l.b16 %v284
        %v521 = vunpack.c.h.b16 %v284
        %v522 = vunpack.c.l.b16 %v285
        %v523 = vunpack.c.h.b16 %v285
        %v524 = vunpack.c.l.b16 %v286
        %v525 = vunpack.c.h.b16 %v286
        %v526 = vunpack.c.l.b16 %v287
        %v527 = vunpack.c.h.b16 %v287
        %v528 = vpack.c.b16 %v438, %v432
        %v529 = vpack.c.b16 %v439, %v433
        %v530 = vpack.c.b16 %v440, %v434
        %v531 = vpack.c.b16 %v441, %v435
        %v532 = vpack.c.b16 %v442, %v436
        %v533 = vpack.c.b16 %v443, %v437
        %v534 = vpack.c.b16 %v450, %v444
        %v535 = vpack.c.b16 %v451, %v445
        %v536 = vpack.c.b16 %v452, %v446
        %v537 = vpack.c.b16 %v453, %v447
        %v538 = vpack.c.b16 %v454, %v448
        %v539 = vpack.c.b16 %v455, %v449
        %v540 = vpack.c.b16 %v462, %v456
        %v541 = vpack.c.b16 %v463, %v457
        %v542 = vpack.c.b16 %v464, %v458
        %v543 = vpack.c.b16 %v465, %v459
        %v544 = vpack.c.b16 %v466, %v460
        %v545 = vpack.c.b16 %v467, %v461
        %v546 = vpack.c.b16 %v474, %v468
        %v547 = vpack.c.b16 %v475, %v469
        %v548 = vpack.c.b16 %v476, %v470
        %v549 = vpack.c.b16 %v477, %v471
        %v550 = vpack.c.b16 %v478, %v472
        %v551 = vpack.c.b16 %v479, %v473
        %v552 = vpack.c.b16 %v486, %v480
        %v553 = vpack.c.b16 %v487, %v481
        %v554 = vpack.c.b16 %v488, %v482
        %v555 = vpack.c.b16 %v489, %v483
        %v556 = vpack.c.b16 %v490, %v484
        %v557 = vpack.c.b16 %v491, %v485
        %v558 = vpack.c.b16 %v498, %v492
        %v559 = vpack.c.b16 %v499, %v493
        %v560 = vpack.c.b16 %v500, %v494
        %v561 = vpack.c.b16 %v501, %v495
        %v562 = vpack.c.b16 %v502, %v496
        %v563 = vpack.c.b16 %v503, %v497
        %v564 = vpack.c.b16 %v510, %v504
        %v565 = vpack.c.b16 %v511, %v505
        %v566 = vpack.c.b16 %v512, %v506
        %v567 = vpack.c.b16 %v513, %v507
        %v568 = vpack.c.b16 %v514, %v508
        %v569 = vpack.c.b16 %v515, %v509
        %v570 = vpack.c.b16 %v522, %v516
        %v571 = vpack.c.b16 %v523, %v517
        %v572 = vpack.c.b16 %v524, %v518
        %v573 = vpack.c.b16 %v525, %v519
        %v574 = vpack.c.b16 %v526, %v520
        %v575 = vpack.c.b16 %v527, %v521
        %v720 = vunpack.c.l.b16 %v288
        %v721 = vunpack.c.h.b16 %v288
        %v722 = vunpack.c.l.b16 %v289
        %v723 = vunpack.c.h.b16 %v289
        %v724 = vunpack.c.l.b16 %v290
        %v725 = vunpack.c.h.b16 %v290
        %v726 = vunpack.c.l.b16 %v291
        %v727 = vunpack.c.h.b16 %v291
        %v728 = vunpack.c.l.b16 %v292
        %v729 = vunpack.c.h.b16 %v292
        %v730 = vunpack.c.l.b16 %v293
        %v731 = vunpack.c.h.b16 %v293
        %v732 = vunpack.c.l.b16 %v294
        %v733 = vunpack.c.h.b16 %v294
        %v734 = vunpack.c.l.b16 %v295
        %v735 = vunpack.c.h.b16 %v295
        %v736 = vunpack.c.l.b16 %v296
        %v737 = vunpack.c.h.b16 %v296
        %v738 = vunpack.c.l.b16 %v297
        %v739 = vunpack.c.h.b16 %v297
        %v740 = vunpack.c.l.b16 %v298
        %v741 = vunpack.c.h.b16 %v298
        %v742 = vunpack.c.l.b16 %v299
        %v743 = vunpack.c.h.b16 %v299
        %v744 = vunpack.c.l.b16 %v300
        %v745 = vunpack.c.h.b16 %v300
        %v746 = vunpack.c.l.b16 %v301
        %v747 = vunpack.c.h.b16 %v301
        %v748 = vunpack.c.l.b16 %v302
        %v749 = vunpack.c.h.b16 %v302
        %v750 = vunpack.c.l.b16 %v303
        %v751 = vunpack.c.h.b16 %v303
        %v752 = vunpack.c.l.b16 %v304
        %v753 = vunpack.c.h.b16 %v304
        %v754 = vunpack.c.l.b16 %v305
        %v755 = vunpack.c.h.b16 %v305
        %v756 = vunpack.c.l.b16 %v306
        %v757 = vunpack.c.h.b16 %v306
        %v758 = vunpack.c.l.b16 %v307
        %v759 = vunpack.c.h.b16 %v307
        %v760 = vunpack.c.l.b16 %v308
        %v761 = vunpack.c.h.b16 %v308
        %v762 = vunpack.c.l.b16 %v309
        %v763 = vunpack.c.h.b16 %v309
        %v764 = vunpack.c.l.b16 %v310
        %v765 = vunpack.c.h.b16 %v310
        %v766 = vunpack.c.l.b16 %v311
        %v767 = vunpack.c.h.b16 %v311
        %v768 = vunpack.c.l.b16 %v312
        %v769 = vunpack.c.h.b16 %v312
        %v770 = vunpack.c.l.b16 %v313
        %v771 = vunpack.c.h.b16 %v313
        %v772 = vunpack.c.l.b16 %v314
        %v773 = vunpack.c.h.b16 %v314
        %v774 = vunpack.c.l.b16 %v315
        %v775 = vunpack.c.h.b16 %v315
        %v776 = vunpack.c.l.b16 %v316
        %v777 = vunpack.c.h.b16 %v316
        %v778 = vunpack.c.l.b16 %v317
        %v779 = vunpack.c.h.b16 %v317
        %v780 = vunpack.c.l.b16 %v318
        %v781 = vunpack.c.h.b16 %v318
        %v782 = vunpack.c.l.b16 %v319
        %v783 = vunpack.c.h.b16 %v319
        %v784 = vunpack.c.l.b16 %v320
        %v785 = vunpack.c.h.b16 %v320
        %v786 = vunpack.c.l.b16 %v321
        %v787 = vunpack.c.h.b16 %v321
        %v788 = vunpack.c.l.b16 %v322
        %v789 = vunpack.c.h.b16 %v322
        %v790 = vunpack.c.l.b16 %v323
        %v791 = vunpack.c.h.b16 %v323
        %v792 = vunpack.c.l.b16 %v324
        %v793 = vunpack.c.h.b16 %v324
        %v794 = vunpack.c.l.b16 %v325
        %v795 = vunpack.c.h.b16 %v325
        %v796 = vunpack.c.l.b16 %v326
        %v797 = vunpack.c.h.b16 %v326
        %v798 = vunpack.c.l.b16 %v327
        %v799 = vunpack.c.h.b16 %v327
        %v800 = vunpack.c.l.b16 %v328
        %v801 = vunpack.c.h.b16 %v328
        %v802 = vunpack.c.l.b16 %v329
        %v803 = vunpack.c.h.b16 %v329
        %v804 = vunpack.c.l.b16 %v330
        %v805 = vunpack.c.h.b16 %v330
        %v806 = vunpack.c.l.b16 %v331
        %v807 = vunpack.c.h.b16 %v331
        %v808 = vunpack.c.l.b16 %v332
        %v809 = vunpack.c.h.b16 %v332
        %v810 = vunpack.c.l.b16 %v333
        %v811 = vunpack.c.h.b16 %v333
        %v812 = vunpack.c.l.b16 %v334
        %v813 = vunpack.c.h.b16 %v334
        %v814 = vunpack.c.l.b16 %v335
        %v815 = vunpack.c.h.b16 %v335
        %v816 = vunpack.c.l.b16 %v336
        %v817 = vunpack.c.h.b16 %v336
        %v818 = vunpack.c.l.b16 %v337
        %v819 = vunpack.c.h.b16 %v337
        %v820 = vunpack.c.l.b16 %v338
        %v821 = vunpack.c.h.b16 %v338
        %v822 = vunpack.c.l.b16 %v339
        %v823 = vunpack.c.h.b16 %v339
        %v824 = vunpack.c.l.b16 %v340
        %v825 = vunpack.c.h.b16 %v340
        %v826 = vunpack.c.l.b16 %v341
        %v827 = vunpack.c.h.b16 %v341
        %v828 = vunpack.c.l.b16 %v342
        %v829 = vunpack.c.h.b16 %v342
        %v830 = vunpack.c.l.b16 %v343
        %v831 = vunpack.c.h.b16 %v343
        %v832 = vunpack.c.l.b16 %v344
        %v833 = vunpack.c.h.b16 %v344
        %v834 = vunpack.c.l.b16 %v345
        %v835 = vunpack.c.h.b16 %v345
        %v836 = vunpack.c.l.b16 %v346
        %v837 = vunpack.c.h.b16 %v346
        %v838 = vunpack.c.l.b16 %v347
        %v839 = vunpack.c.h.b16 %v347
        %v840 = vunpack.c.l.b16 %v348
        %v841 = vunpack.c.h.b16 %v348
        %v842 = vunpack.c.l.b16 %v349
        %v843 = vunpack.c.h.b16 %v349
        %v844 = vunpack.c.l.b16 %v350
        %v845 = vunpack.c.h.b16 %v350
        %v846 = vunpack.c.l.b16 %v351
        %v847 = vunpack.c.h.b16 %v351
        %v848 = vunpack.c.l.b16 %v352
        %v849 = vunpack.c.h.b16 %v352
        %v850 = vunpack.c.l.b16 %v353
        %v851 = vunpack.c.h.b16 %v353
        %v852 = vunpack.c.l.b16 %v354
        %v853 = vunpack.c.h.b16 %v354
        %v854 = vunpack.c.l.b16 %v355
        %v855 = vunpack.c.h.b16 %v355
        %v856 = vunpack.c.l.b16 %v356
        %v857 = vunpack.c.h.b16 %v356
        %v858 = vunpack.c.l.b16 %v357
        %v859 = vunpack.c.h.b16 %v357
        %v860 = vunpack.c.l.b16 %v358
        %v861 = vunpack.c.h.b16 %v358
        %v862 = vunpack.c.l.b16 %v359
        %v863 = vunpack.c.h.b16 %v359
        %v864 = vunpack.c.l.b16 %v360
        %v865 = vunpack.c.h.b16 %v360
        %v866 = vunpack.c.l.b16 %v361
        %v867 = vunpack.c.h.b16 %v361
        %v868 = vunpack.c.l.b16 %v362
        %v869 = vunpack.c.h.b16 %v362
        %v870 = vunpack.c.l.b16 %v363
        %v871 = vunpack.c.h.b16 %v363
        %v872 = vunpack.c.l.b16 %v364
        %v873 = vunpack.c.h.b16 %v364
        %v874 = vunpack.c.l.b16 %v365
        %v875 = vunpack.c.h.b16 %v365
        %v876 = vunpack.c.l.b16 %v366
        %v877 = vunpack.c.h.b16 %v366
        %v878 = vunpack.c.l.b16 %v367
        %v879 = vunpack.c.h.b16 %v367
        %v880 = vunpack.c.l.b16 %v368
        %v881 = vunpack.c.h.b16 %v368
        %v882 = vunpack.c.l.b16 %v369
        %v883 = vunpack.c.h.b16 %v369
        %v884 = vunpack.c.l.b16 %v370
        %v885 = vunpack.c.h.b16 %v370
        %v886 = vunpack.c.l.b16 %v371
        %v887 = vunpack.c.h.b16 %v371
        %v888 = vunpack.c.l.b16 %v372
        %v889 = vunpack.c.h.b16 %v372
        %v890 = vunpack.c.l.b16 %v373
        %v891 = vunpack.c.h.b16 %v373
        %v892 = vunpack.c.l.b16 %v374
        %v893 = vunpack.c.h.b16 %v374
        %v894 = vunpack.c.l.b16 %v375
        %v895 = vunpack.c.h.b16 %v375
        %v896 = vunpack.c.l.b16 %v376
        %v897 = vunpack.c.h.b16 %v376
        %v898 = vunpack.c.l.b16 %v377
        %v899 = vunpack.c.h.b16 %v377
        %v900 = vunpack.c.l.b16 %v378
        %v901 = vunpack.c.h.b16 %v378
        %v902 = vunpack.c.l.b16 %v379
        %v903 = vunpack.c.h.b16 %v379
        %v904 = vunpack.c.l.b16 %v380
        %v905 = vunpack.c.h.b16 %v380
        %v906 = vunpack.c.l.b16 %v381
        %v907 = vunpack.c.h.b16 %v381
        %v908 = vunpack.c.l.b16 %v382
        %v909 = vunpack.c.h.b16 %v382
        %v910 = vunpack.c.l.b16 %v383
        %v911 = vunpack.c.h.b16 %v383
        %v912 = vpack.c.b16 %v722, %v720
        %v913 = vpack.c.b16 %v723, %v721
        %v914 = vpack.c.b16 %v726, %v724
        %v915 = vpack.c.b16 %v727, %v725
        %v916 = vpack.c.b16 %v730, %v728
        %v917 = vpack.c.b16 %v731, %v729
        %v918 = vpack.c.b16 %v734, %v732
        %v919 = vpack.c.b16 %v735, %v733
        %v920 = vpack.c.b16 %v738, %v736
        %v921 = vpack.c.b16 %v739, %v737
        %v922 = vpack.c.b16 %v742, %v740
        %v923 = vpack.c.b16 %v743, %v741
        %v924 = vpack.c.b16 %v746, %v744
        %v925 = vpack.c.b16 %v747, %v745
        %v926 = vpack.c.b16 %v750, %v748
        %v927 = vpack.c.b16 %v751, %v749
        %v928 = vpack.c.b16 %v754, %v752
        %v929 = vpack.c.b16 %v755, %v753
        %v930 = vpack.c.b16 %v758, %v756
        %v931 = vpack.c.b16 %v759, %v757
        %v932 = vpack.c.b16 %v762, %v760
        %v933 = vpack.c.b16 %v763, %v761
        %v934 = vpack.c.b16 %v766, %v764
        %v935 = vpack.c.b16 %v767, %v765
        %v936 = vpack.c.b16 %v770, %v768
        %v937 = vpack.c.b16 %v771, %v769
        %v938 = vpack.c.b16 %v774, %v772
        %v939 = vpack.c.b16 %v775, %v773
        %v940 = vpack.c.b16 %v778, %v776
        %v941 = vpack.c.b16 %v779, %v777
        %v942 = vpack.c.b16 %v782, %v780
        %v943 = vpack.c.b16 %v783, %v781
        %v944 = vpack.c.b16 %v786, %v784
        %v945 = vpack.c.b16 %v787, %v785
        %v946 = vpack.c.b16 %v790, %v788
        %v947 = vpack.c.b16 %v791, %v789
        %v948 = vpack.c.b16 %v794, %v792
        %v949 = vpack.c.b16 %v795, %v793
        %v950 = vpack.c.b16 %v798, %v796
        %v951 = vpack.c.b16 %v799, %v797
        %v952 = vpack.c.b16 %v802, %v800
        %v953 = vpack.c.b16 %v803, %v801
        %v954 = vpack.c.b16 %v806, %v804
        %v955 = vpack.c.b16 %v807, %v805
        %v956 = vpack.c.b16 %v810, %v808
        %v957 = vpack.c.b16 %v811, %v809
        %v958 = vpack.c.b16 %v814, %v812
        %v959 = vpack.c.b16 %v815, %v813
        %v960 = vpack.c.b16 %v818, %v816
        %v961 = vpack.c.b16 %v819, %v817
        %v962 = vpack.c.b16 %v822, %v820
        %v963 = vpack.c.b16 %v823, %v821
        %v964 = vpack.c.b16 %v826, %v824
        %v965 = vpack.c.b16 %v827, %v825
        %v966 = vpack.c.b16 %v830, %v828
        %v967 = vpack.c.b16 %v831, %v829
        %v968 = vpack.c.b16 %v834, %v832
        %v969 = vpack.c.b16 %v835, %v833
        %v970 = vpack.c.b16 %v838, %v836
        %v971 = vpack.c.b16 %v839, %v837
        %v972 = vpack.c.b16 %v842, %v840
        %v973 = vpack.c.b16 %v843, %v841
        %v974 = vpack.c.b16 %v846, %v844
        %v975 = vpack.c.b16 %v847, %v845
        %v976 = vpack.c.b16 %v850, %v848
        %v977 = vpack.c.b16 %v851, %v849
        %v978 = vpack.c.b16 %v854, %v852
        %v979 = vpack.c.b16 %v855, %v853
        %v980 = vpack.c.b16 %v858, %v856
        %v981 = vpack.c.b16 %v859, %v857
        %v982 = vpack.c.b16 %v862, %v860
        %v983 = vpack.c.b16 %v863, %v861
        %v984 = vpack.c.b16 %v866, %v864
        %v985 = vpack.c.b16 %v867, %v865
        %v986 = vpack.c.b16 %v870, %v868
        %v987 = vpack.c.b16 %v871, %v869
        %v988 = vpack.c.b16 %v874, %v872
        %v989 = vpack.c.b16 %v875, %v873
        %v990 = vpack.c.b16 %v878, %v876
        %v991 = vpack.c.b16 %v879, %v877
        %v992 = vpack.c.b16 %v882, %v880
        %v993 = vpack.c.b16 %v883, %v881
        %v994 = vpack.c.b16 %v886, %v884
        %v995 = vpack.c.b16 %v887, %v885
        %v996 = vpack.c.b16 %v890, %v888
        %v997 = vpack.c.b16 %v891, %v889
        %v998 = vpack.c.b16 %v894, %v892
        %v999 = vpack.c.b16 %v895, %v893
        %v1000 = vpack.c.b16 %v898, %v896
        %v1001 = vpack.c.b16 %v899, %v897
        %v1002 = vpack.c.b16 %v902, %v900
        %v1003 = vpack.c.b16 %v903, %v901
        %v1004 = vpack.c.b16 %v906, %v904
        %v1005 = vpack.c.b16 %v907, %v905
        %v1006 = vpack.c.b16 %v910, %v908
        %v1007 = vpack.c.b16 %v911, %v909
        %1104 = vmatprep.subr.bf16.mxu0 %v913
        %1105 = vmatpush1.bf16.msra.mxu0 %v912
        %1106 = vmatprep.subr.bf16.mxu0 %v915
        %1107 = vmatpush1.bf16.msra.mxu0 %v914
        %1108 = vmatprep.subr.bf16.mxu0 %v917
        %1109 = vmatpush1.bf16.msra.mxu0 %v916
        %1110 = vmatprep.subr.bf16.mxu0 %v919
        %1111 = vmatpush1.bf16.msra.mxu0 %v918
        %1112 = vmatprep.subr.bf16.mxu0 %v921
        %1113 = vmatpush1.bf16.msra.mxu0 %v920
        %1114 = vmatprep.subr.bf16.mxu0 %v923
        %1115 = vmatpush1.bf16.msra.mxu0 %v922
        %1116 = vmatprep.subr.bf16.mxu0 %v925
        %1117 = vmatpush1.bf16.msra.mxu0 %v924
        %1118 = vmatprep.subr.bf16.mxu0 %v927
        %1119 = vmatpush1.bf16.msra.mxu0 %v926
        %1120 = vmatprep.subr.bf16.mxu0 %v929
        %1121 = vmatpush1.bf16.msra.mxu0 %v928
        %1122 = vmatprep.subr.bf16.mxu0 %v931
        %1123 = vmatpush1.bf16.msra.mxu0 %v930
        %1124 = vmatprep.subr.bf16.mxu0 %v933
        %1125 = vmatpush1.bf16.msra.mxu0 %v932
        %1126 = vmatprep.subr.bf16.mxu0 %v935
        %1127 = vmatpush1.bf16.msra.mxu0 %v934
        %1128 = vmatprep.subr.bf16.mxu0 %v937
        %1129 = vmatpush1.bf16.msra.mxu0 %v936
        %1130 = vmatprep.subr.bf16.mxu0 %v939
        %1131 = vmatpush1.bf16.msra.mxu0 %v938
        %1132 = vmatprep.subr.bf16.mxu0 %v941
        %1133 = vmatpush1.bf16.msra.mxu0 %v940
        %1134 = vmatprep.subr.bf16.mxu0 %v943
        %1135 = vmatpush1.bf16.msra.mxu0 %v942
        %1136 = vmatprep.mubr.bf16.mxu0 %v529
        %1137 = vmatmul.mubr.bf16.gmra.mrb[0].mxu0 %v528
        %v1138 = vpop.f32.mrb[0].mxu0
        %v1139 = vadd.f32 0.0, %v1138
        %v1140 = vpop.f32.mrb[0].mxu0
        %v1141 = vadd.f32 0.0, %v1140
        %v1142 = vpop.f32.mrb[0].mxu0
        %v1143 = vadd.f32 0.0, %v1142
        %v1144 = vpop.f32.mrb[0].mxu0
        %v1145 = vadd.f32 0.0, %v1144
        %1146 = vmatprep.mubr.bf16.mxu0 %v535
        %1147 = vmatmul.mubr.bf16.gmra.mrb[0].mxu0 %v534
        %v1148 = vpop.f32.mrb[0].mxu0
        %v1149 = vadd.f32 0.0, %v1148
        %v1150 = vpop.f32.mrb[0].mxu0
        %v1151 = vadd.f32 0.0, %v1150
        %v1152 = vpop.f32.mrb[0].mxu0
        %v1153 = vadd.f32 0.0, %v1152
        %v1154 = vpop.f32.mrb[0].mxu0
        %v1155 = vadd.f32 0.0, %v1154
        %1156 = vmatprep.mubr.bf16.mxu0 %v541
        %1157 = vmatmul.mubr.bf16.gmra.mrb[0].mxu0 %v540
        %v1158 = vpop.f32.mrb[0].mxu0
        %v1159 = vadd.f32 0.0, %v1158
        %v1160 = vpop.f32.mrb[0].mxu0
        %v1161 = vadd.f32 0.0, %v1160
        %v1162 = vpop.f32.mrb[0].mxu0
        %v1163 = vadd.f32 0.0, %v1162
        %v1164 = vpop.f32.mrb[0].mxu0
        %v1165 = vadd.f32 0.0, %v1164
        %1166 = vmatprep.mubr.bf16.mxu0 %v547
        %1167 = vmatmul.mubr.bf16.gmra.mrb[0].mxu0 %v546
        %v1168 = vpop.f32.mrb[0].mxu0
        %v1169 = vadd.f32 0.0, %v1168
        %v1170 = vpop.f32.mrb[0].mxu0
        %v1171 = vadd.f32 0.0, %v1170
        %v1172 = vpop.f32.mrb[0].mxu0
        %v1173 = vadd.f32 0.0, %v1172
        %v1174 = vpop.f32.mrb[0].mxu0
        %v1175 = vadd.f32 0.0, %v1174
        %1176 = vmatprep.mubr.bf16.mxu0 %v553
        %1177 = vmatmul.mubr.bf16.gmra.mrb[0].mxu0 %v552
        %v1178 = vpop.f32.mrb[0].mxu0
        %v1179 = vadd.f32 0.0, %v1178
        %v1180 = vpop.f32.mrb[0].mxu0
        %v1181 = vadd.f32 0.0, %v1180
        %v1182 = vpop.f32.mrb[0].mxu0
        %v1183 = vadd.f32 0.0, %v1182
        %v1184 = vpop.f32.mrb[0].mxu0
        %v1185 = vadd.f32 0.0, %v1184
        %1186 = vmatprep.mubr.bf16.mxu0 %v559
        %1187 = vmatmul.mubr.bf16.gmra.mrb[0].mxu0 %v558
        %v1188 = vpop.f32.mrb[0].mxu0
        %v1189 = vadd.f32 0.0, %v1188
        %v1190 = vpop.f32.mrb[0].mxu0
        %v1191 = vadd.f32 0.0, %v1190
        %v1192 = vpop.f32.mrb[0].mxu0
        %v1193 = vadd.f32 0.0, %v1192
        %v1194 = vpop.f32.mrb[0].mxu0
        %v1195 = vadd.f32 0.0, %v1194
        %1196 = vmatprep.mubr.bf16.mxu0 %v565
        %1197 = vmatmul.mubr.bf16.gmra.mrb[0].mxu0 %v564
        %v1198 = vpop.f32.mrb[0].mxu0
        %v1199 = vadd.f32 0.0, %v1198
        %v1200 = vpop.f32.mrb[0].mxu0
        %v1201 = vadd.f32 0.0, %v1200
        %v1202 = vpop.f32.mrb[0].mxu0
        %v1203 = vadd.f32 0.0, %v1202
        %v1204 = vpop.f32.mrb[0].mxu0
        %v1205 = vadd.f32 0.0, %v1204
        %1206 = vmatprep.mubr.bf16.mxu0 %v571
        %1207 = vmatmul.mubr.bf16.gmra.mrb[0].mxu0 %v570
        %v1208 = vpop.f32.mrb[0].mxu0
        %v1209 = vadd.f32 0.0, %v1208
        %v1210 = vpop.f32.mrb[0].mxu0
        %v1211 = vadd.f32 0.0, %v1210
        %v1212 = vpop.f32.mrb[0].mxu0
        %v1213 = vadd.f32 0.0, %v1212
        %v1214 = vpop.f32.mrb[0].mxu0
        %v1215 = vadd.f32 0.0, %v1214
        %1216 = vdwg.mxu0
        %1217 = vmatprep.subr.bf16.mxu0 %v945
        %1218 = vmatpush1.bf16.msra.mxu0 %v944
        %1219 = vmatprep.subr.bf16.mxu0 %v947
        %1220 = vmatpush1.bf16.msra.mxu0 %v946
        %1221 = vmatprep.subr.bf16.mxu0 %v949
        %1222 = vmatpush1.bf16.msra.mxu0 %v948
        %1223 = vmatprep.subr.bf16.mxu0 %v951
        %1224 = vmatpush1.bf16.msra.mxu0 %v950
        %1225 = vmatprep.subr.bf16.mxu0 %v953
        %1226 = vmatpush1.bf16.msra.mxu0 %v952
        %1227 = vmatprep.subr.bf16.mxu0 %v955
        %1228 = vmatpush1.bf16.msra.mxu0 %v954
        %1229 = vmatprep.subr.bf16.mxu0 %v957
        %1230 = vmatpush1.bf16.msra.mxu0 %v956
        %1231 = vmatprep.subr.bf16.mxu0 %v959
        %1232 = vmatpush1.bf16.msra.mxu0 %v958
        %1233 = vmatprep.subr.bf16.mxu0 %v961
        %1234 = vmatpush1.bf16.msra.mxu0 %v960
        %1235 = vmatprep.subr.bf16.mxu0 %v963
        %1236 = vmatpush1.bf16.msra.mxu0 %v962
        %1237 = vmatprep.subr.bf16.mxu0 %v965
        %1238 = vmatpush1.bf16.msra.mxu0 %v964
        %1239 = vmatprep.subr.bf16.mxu0 %v967
        %1240 = vmatpush1.bf16.msra.mxu0 %v966
        %1241 = vmatprep.subr.bf16.mxu0 %v969
        %1242 = vmatpush1.bf16.msra.mxu0 %v968
        %1243 = vmatprep.subr.bf16.mxu0 %v971
        %1244 = vmatpush1.bf16.msra.mxu0 %v970
        %1245 = vmatprep.subr.bf16.mxu0 %v973
        %1246 = vmatpush1.bf16.msra.mxu0 %v972
        %1247 = vmatprep.subr.bf16.mxu0 %v975
        %1248 = vmatpush1.bf16.msra.mxu0 %v974
        %1249 = vmatprep.mubr.bf16.mxu0 %v531
        %1250 = vmatmul.mubr.bf16.gmra.mrb[0].mxu0 %v530
        %v1251 = vpop.f32.mrb[0].mxu0
        %v1252 = vadd.f32 %v1139, %v1251
        %v1253 = vpop.f32.mrb[0].mxu0
        %v1254 = vadd.f32 %v1141, %v1253
        %v1255 = vpop.f32.mrb[0].mxu0
        %v1256 = vadd.f32 %v1143, %v1255
        %v1257 = vpop.f32.mrb[0].mxu0
        %v1258 = vadd.f32 %v1145, %v1257
        %1259 = vmatprep.mubr.bf16.mxu0 %v537
        %1260 = vmatmul.mubr.bf16.gmra.mrb[0].mxu0 %v536
        %v1261 = vpop.f32.mrb[0].mxu0
        %v1262 = vadd.f32 %v1149, %v1261
        %v1263 = vpop.f32.mrb[0].mxu0
        %v1264 = vadd.f32 %v1151, %v1263
        %v1265 = vpop.f32.mrb[0].mxu0
        %v1266 = vadd.f32 %v1153, %v1265
        %v1267 = vpop.f32.mrb[0].mxu0
        %v1268 = vadd.f32 %v1155, %v1267
        %1269 = vmatprep.mubr.bf16.mxu0 %v543
        %1270 = vmatmul.mubr.bf16.gmra.mrb[0].mxu0 %v542
        %v1271 = vpop.f32.mrb[0].mxu0
        %v1272 = vadd.f32 %v1159, %v1271
        %v1273 = vpop.f32.mrb[0].mxu0
        %v1274 = vadd.f32 %v1161, %v1273
        %v1275 = vpop.f32.mrb[0].mxu0
        %v1276 = vadd.f32 %v1163, %v1275
        %v1277 = vpop.f32.mrb[0].mxu0
        %v1278 = vadd.f32 %v1165, %v1277
        %1279 = vmatprep.mubr.bf16.mxu0 %v549
        %1280 = vmatmul.mubr.bf16.gmra.mrb[0].mxu0 %v548
        %v1281 = vpop.f32.mrb[0].mxu0
        %v1282 = vadd.f32 %v1169, %v1281
        %v1283 = vpop.f32.mrb[0].mxu0
        %v1284 = vadd.f32 %v1171, %v1283
        %v1285 = vpop.f32.mrb[0].mxu0
        %v1286 = vadd.f32 %v1173, %v1285
        %v1287 = vpop.f32.mrb[0].mxu0
        %v1288 = vadd.f32 %v1175, %v1287
        %1289 = vmatprep.mubr.bf16.mxu0 %v555
        %1290 = vmatmul.mubr.bf16.gmra.mrb[0].mxu0 %v554
        %v1291 = vpop.f32.mrb[0].mxu0
        %v1292 = vadd.f32 %v1179, %v1291
        %v1293 = vpop.f32.mrb[0].mxu0
        %v1294 = vadd.f32 %v1181, %v1293
        %v1295 = vpop.f32.mrb[0].mxu0
        %v1296 = vadd.f32 %v1183, %v1295
        %v1297 = vpop.f32.mrb[0].mxu0
        %v1298 = vadd.f32 %v1185, %v1297
        %1299 = vmatprep.mubr.bf16.mxu0 %v561
        %1300 = vmatmul.mubr.bf16.gmra.mrb[0].mxu0 %v560
        %v1301 = vpop.f32.mrb[0].mxu0
        %v1302 = vadd.f32 %v1189, %v1301
        %v1303 = vpop.f32.mrb[0].mxu0
        %v1304 = vadd.f32 %v1191, %v1303
        %v1305 = vpop.f32.mrb[0].mxu0
        %v1306 = vadd.f32 %v1193, %v1305
        %v1307 = vpop.f32.mrb[0].mxu0
        %v1308 = vadd.f32 %v1195, %v1307
        %1309 = vmatprep.mubr.bf16.mxu0 %v567
        %1310 = vmatmul.mubr.bf16.gmra.mrb[0].mxu0 %v566
        %v1311 = vpop.f32.mrb[0].mxu0
        %v1312 = vadd.f32 %v1199, %v1311
        %v1313 = vpop.f32.mrb[0].mxu0
        %v1314 = vadd.f32 %v1201, %v1313
        %v1315 = vpop.f32.mrb[0].mxu0
        %v1316 = vadd.f32 %v1203, %v1315
        %v1317 = vpop.f32.mrb[0].mxu0
        %v1318 = vadd.f32 %v1205, %v1317
        %1319 = vmatprep.mubr.bf16.mxu0 %v573
        %1320 = vmatmul.mubr.bf16.gmra.mrb[0].mxu0 %v572
        %v1321 = vpop.f32.mrb[0].mxu0
        %v1322 = vadd.f32 %v1209, %v1321
        %v1323 = vpop.f32.mrb[0].mxu0
        %v1324 = vadd.f32 %v1211, %v1323
        %v1325 = vpop.f32.mrb[0].mxu0
        %v1326 = vadd.f32 %v1213, %v1325
        %v1327 = vpop.f32.mrb[0].mxu0
        %v1328 = vadd.f32 %v1215, %v1327
        %1329 = vdwg.mxu0
        %1330 = vmatprep.subr.bf16.mxu0 %v977
        %1331 = vmatpush1.bf16.msra.mxu0 %v976
        %1332 = vmatprep.subr.bf16.mxu0 %v979
        %1333 = vmatpush1.bf16.msra.mxu0 %v978
        %1334 = vmatprep.subr.bf16.mxu0 %v981
        %1335 = vmatpush1.bf16.msra.mxu0 %v980
        %1336 = vmatprep.subr.bf16.mxu0 %v983
        %1337 = vmatpush1.bf16.msra.mxu0 %v982
        %1338 = vmatprep.subr.bf16.mxu0 %v985
        %1339 = vmatpush1.bf16.msra.mxu0 %v984
        %1340 = vmatprep.subr.bf16.mxu0 %v987
        %1341 = vmatpush1.bf16.msra.mxu0 %v986
        %1342 = vmatprep.subr.bf16.mxu0 %v989
        %1343 = vmatpush1.bf16.msra.mxu0 %v988
        %1344 = vmatprep.subr.bf16.mxu0 %v991
        %1345 = vmatpush1.bf16.msra.mxu0 %v990
        %1346 = vmatprep.subr.bf16.mxu0 %v993
        %1347 = vmatpush1.bf16.msra.mxu0 %v992
        %1348 = vmatprep.subr.bf16.mxu0 %v995
        %1349 = vmatpush1.bf16.msra.mxu0 %v994
        %1350 = vmatprep.subr.bf16.mxu0 %v997
        %1351 = vmatpush1.bf16.msra.mxu0 %v996
        %1352 = vmatprep.subr.bf16.mxu0 %v999
        %1353 = vmatpush1.bf16.msra.mxu0 %v998
        %1354 = vmatprep.subr.bf16.mxu0 %v1001
        %1355 = vmatpush1.bf16.msra.mxu0 %v1000
        %1356 = vmatprep.subr.bf16.mxu0 %v1003
        %1357 = vmatpush1.bf16.msra.mxu0 %v1002
        %1358 = vmatprep.subr.bf16.mxu0 %v1005
        %1359 = vmatpush1.bf16.msra.mxu0 %v1004
        %1360 = vmatprep.subr.bf16.mxu0 %v1007
        %1361 = vmatpush1.bf16.msra.mxu0 %v1006
        %1362 = vmatprep.mubr.bf16.mxu0 %v533
        %1363 = vmatmul.mubr.bf16.gmra.mrb[0].mxu0 %v532
        %v1364 = vpop.f32.mrb[0].mxu0
        %v1365 = vadd.f32 %v1252, %v1364
        %v1366 = vpop.f32.mrb[0].mxu0
        %v1367 = vadd.f32 %v1254, %v1366
        %v1368 = vpop.f32.mrb[0].mxu0
        %v1369 = vadd.f32 %v1256, %v1368
        %v1370 = vpop.f32.mrb[0].mxu0
        %v1371 = vadd.f32 %v1258, %v1370
        %1372 = vmatprep.mubr.bf16.mxu0 %v539
        %1373 = vmatmul.mubr.bf16.gmra.mrb[0].mxu0 %v538
        %v1374 = vpop.f32.mrb[0].mxu0
        %v1375 = vadd.f32 %v1262, %v1374
        %v1376 = vpop.f32.mrb[0].mxu0
        %v1377 = vadd.f32 %v1264, %v1376
        %v1378 = vpop.f32.mrb[0].mxu0
        %v1379 = vadd.f32 %v1266, %v1378
        %v1380 = vpop.f32.mrb[0].mxu0
        %v1381 = vadd.f32 %v1268, %v1380
        %1382 = vmatprep.mubr.bf16.mxu0 %v545
        %1383 = vmatmul.mubr.bf16.gmra.mrb[0].mxu0 %v544
        %v1384 = vpop.f32.mrb[0].mxu0
        %v1385 = vadd.f32 %v1272, %v1384
        %v1386 = vpop.f32.mrb[0].mxu0
        %v1387 = vadd.f32 %v1274, %v1386
        %v1388 = vpop.f32.mrb[0].mxu0
        %v1389 = vadd.f32 %v1276, %v1388
        %v1390 = vpop.f32.mrb[0].mxu0
        %v1391 = vadd.f32 %v1278, %v1390
        %1392 = vmatprep.mubr.bf16.mxu0 %v551
        %1393 = vmatmul.mubr.bf16.gmra.mrb[0].mxu0 %v550
        %v1394 = vpop.f32.mrb[0].mxu0
        %v1395 = vadd.f32 %v1282, %v1394
        %v1396 = vpop.f32.mrb[0].mxu0
        %v1397 = vadd.f32 %v1284, %v1396
        %v1398 = vpop.f32.mrb[0].mxu0
        %v1399 = vadd.f32 %v1286, %v1398
        %v1400 = vpop.f32.mrb[0].mxu0
        %v1401 = vadd.f32 %v1288, %v1400
        %1402 = vmatprep.mubr.bf16.mxu0 %v557
        %1403 = vmatmul.mubr.bf16.gmra.mrb[0].mxu0 %v556
        %v1404 = vpop.f32.mrb[0].mxu0
        %v1405 = vadd.f32 %v1292, %v1404
        %v1406 = vpop.f32.mrb[0].mxu0
        %v1407 = vadd.f32 %v1294, %v1406
        %v1408 = vpop.f32.mrb[0].mxu0
        %v1409 = vadd.f32 %v1296, %v1408
        %v1410 = vpop.f32.mrb[0].mxu0
        %v1411 = vadd.f32 %v1298, %v1410
        %1412 = vmatprep.mubr.bf16.mxu0 %v563
        %1413 = vmatmul.mubr.bf16.gmra.mrb[0].mxu0 %v562
        %v1414 = vpop.f32.mrb[0].mxu0
        %v1415 = vadd.f32 %v1302, %v1414
        %v1416 = vpop.f32.mrb[0].mxu0
        %v1417 = vadd.f32 %v1304, %v1416
        %v1418 = vpop.f32.mrb[0].mxu0
        %v1419 = vadd.f32 %v1306, %v1418
        %v1420 = vpop.f32.mrb[0].mxu0
        %v1421 = vadd.f32 %v1308, %v1420
        %1422 = vmatprep.mubr.bf16.mxu0 %v569
        %1423 = vmatmul.mubr.bf16.gmra.mrb[0].mxu0 %v568
        %v1424 = vpop.f32.mrb[0].mxu0
        %v1425 = vadd.f32 %v1312, %v1424
        %v1426 = vpop.f32.mrb[0].mxu0
        %v1427 = vadd.f32 %v1314, %v1426
        %v1428 = vpop.f32.mrb[0].mxu0
        %v1429 = vadd.f32 %v1316, %v1428
        %v1430 = vpop.f32.mrb[0].mxu0
        %v1431 = vadd.f32 %v1318, %v1430
        %1432 = vmatprep.mubr.bf16.mxu0 %v575
        %1433 = vmatmul.mubr.bf16.gmra.mrb[0].mxu0 %v574
        %v1434 = vpop.f32.mrb[0].mxu0
        %v1435 = vadd.f32 %v1322, %v1434
        %v1436 = vpop.f32.mrb[0].mxu0
        %v1437 = vadd.f32 %v1324, %v1436
        %v1438 = vpop.f32.mrb[0].mxu0
        %v1439 = vadd.f32 %v1326, %v1438
        %v1440 = vpop.f32.mrb[0].mxu0
        %v1441 = vadd.f32 %v1328, %v1440
        %1442 = vdwg.mxu0
        %v1443 = vld [vmem:[#allocation2] sm:$0xff]
        %v1444 = vld [vmem:[#allocation2 + $0x8] sm:$0xff]
        %v1445 = vld [vmem:[%s232] sm:$0xf]
        %v1446 = vpack.c.bf16 %v1369, %v1365
        %v1447 = vpack.c.bf16 %v1371, %v1367
        %v1448 = vpack.c.bf16 %v1379, %v1375
        %v1449 = vpack.c.bf16 %v1381, %v1377
        %v1450 = vpack.c.bf16 %v1389, %v1385
        %v1451 = vpack.c.bf16 %v1391, %v1387
        %v1452 = vpack.c.bf16 %v1399, %v1395
        %v1453 = vpack.c.bf16 %v1401, %v1397
        %v1454 = vpack.c.bf16 %v1409, %v1405
        %v1455 = vpack.c.bf16 %v1411, %v1407
        %v1456 = vpack.c.bf16 %v1419, %v1415
        %v1457 = vpack.c.bf16 %v1421, %v1417
        %v1458 = vpack.c.bf16 %v1429, %v1425
        %v1459 = vpack.c.bf16 %v1431, %v1427
        %v1460 = vpack.c.bf16 %v1439, %v1435
        %v1461 = vpack.c.bf16 %v1441, %v1437
        %1462 = vmatprep.subr.bf16.mxu0 %v1447
        %1463 = vmatpush1.bf16.msra.mxu0 %v1446
        %1464 = vmatprep.subr.bf16.mxu0 %v1449
        %1465 = vmatpush1.bf16.msra.mxu0 %v1448
        %1466 = vmatprep.subr.bf16.mxu0 %v1451
        %1467 = vmatpush1.bf16.msra.mxu0 %v1450
        %1468 = vmatprep.subr.bf16.mxu0 %v1453
        %1469 = vmatpush1.bf16.msra.mxu0 %v1452
        %1470 = vmatprep.subr.bf16.mxu0 %v1455
        %1471 = vmatpush1.bf16.msra.mxu0 %v1454
        %1472 = vmatprep.subr.bf16.mxu0 %v1457
        %1473 = vmatpush1.bf16.msra.mxu0 %v1456
        %1474 = vmatprep.subr.bf16.mxu0 %v1459
        %1475 = vmatpush1.bf16.msra.mxu0 %v1458
        %1476 = vmatprep.subr.bf16.mxu0 %v1461
        %1477 = vmatpush1.bf16.msra.mxu0 %v1460
        %1478 = vmatprep.subr.bf16.mxu0 0
        %1479 = vmatpush1.bf16.msra.mxu0 0
        %1480 = vmatprep.subr.bf16.mxu0 0
        %1481 = vmatpush1.bf16.msra.mxu0 0
        %1482 = vmatprep.subr.bf16.mxu0 0
        %1483 = vmatpush1.bf16.msra.mxu0 0
        %1484 = vmatprep.subr.bf16.mxu0 0
        %1485 = vmatpush1.bf16.msra.mxu0 0
        %1486 = vmatprep.subr.bf16.mxu0 0
        %1487 = vmatpush1.bf16.msra.mxu0 0
        %1488 = vmatprep.subr.bf16.mxu0 0
        %1489 = vmatpush1.bf16.msra.mxu0 0
        %1490 = vmatprep.subr.bf16.mxu0 0
        %1491 = vmatpush1.bf16.msra.mxu0 0
        %1492 = vmatprep.subr.bf16.mxu0 0
        %1493 = vmatpush1.bf16.msra.mxu0 0
        %1494 = vmatprep.mubr.bf16.mxu0 0
        %1495 = vmatmul.mubr.bf16.gmra.mrb[0].mxu0 %v1445
        %v1496 = vpop.f32.mrb[0].mxu0
        %v1497 = vadd.f32 0.0, %v1496
        %v1498 = vpop.f32.mrb[0].mxu0
        %v1499 = vadd.f32 0.0, %v1498
        %v1500 = vpop.f32.mrb[0].mxu0
        %v1501 = vpop.f32.mrb[0].mxu0
        %1502 = vdwg.mxu0
        %v1503 = vadd.f32 %v1443, %v1497
        %v1504 = vadd.f32 %v1444, %v1499
        %1505 = vst [vmem:[#allocation2] sm:$0xff] %v1503
        %1506 = vst [vmem:[#allocation2 + $0x8] sm:$0xff] %v1504
        %p1507 = scmp.eq.s32.totalorder %s17, 3
        // Predicated region
        $region45: #{cosine_loss_forward.1} parent=39 // pred_check
          %p1508 = pneg %p1507
        $region46: #{cosine_loss_forward.1} parent=39 // pred_check_branch
          %1510 = sbr.rel (%p1508) target = $region48
        $region47: #{cosine_loss_forward.1} parent=39 // pred_region
          %v1511 = vld [vmem:[#allocation2] sm:$0xff]
          %v1512 = vld [vmem:[#allocation2 + $0x8] sm:$0xff]
          %v1513 = vmul.f32 %v1511, 0.0051020407
          %v1514 = vmul.f32 %v1512, 0.0051020407
          %v1515 = vpack.c.bf16 %v1513, %v1513
          %v1516 = vpack.c.bf16 %v1514, %v1514
          %v1517 = vld [vmem:[%s3] sm:$0xf]
          %v1518 = vld [vmem:[%s3 + $0x4] sm:$0xf]
          %v1519 = vld [vmem:[%s3 + $0x8] sm:$0xf]
          %v1520 = vld [vmem:[%s3 + $0xc] sm:$0xf]
          %v1521 = vld [vmem:[%s3 + $0x10] sm:$0xf]
          %v1522 = vld [vmem:[%s3 + $0x14] sm:$0xf]
          %v1523 = vld [vmem:[%s3 + $0x18] sm:$0xf]
          %v1524 = vld [vmem:[%s3 + $0x1c] sm:$0xf]
          %v1525 = vld [vmem:[%s3 + $0x20] sm:$0xf]
          %v1526 = vld [vmem:[%s3 + $0x24] sm:$0xf]
          %v1527 = vld [vmem:[%s3 + $0x28] sm:$0xf]
          %v1528 = vld [vmem:[%s3 + $0x2c] sm:$0xf]
          %v1529 = vld [vmem:[%s3 + $0x30] sm:$0xf]
          %v1530 = vld [vmem:[%s3 + $0x34] sm:$0xf]
          %v1531 = vld [vmem:[%s3 + $0x38] sm:$0xf]
          %v1532 = vld [vmem:[%s3 + $0x3c] sm:$0xf]
          %v1533 = vld [vmem:[%s3 + $0x40] sm:$0xf]
          %v1534 = vld [vmem:[%s3 + $0x44] sm:$0xf]
          %v1535 = vld [vmem:[%s3 + $0x48] sm:$0xf]
          %v1536 = vld [vmem:[%s3 + $0x4c] sm:$0xf]
          %v1537 = vld [vmem:[%s3 + $0x50] sm:$0xf]
          %v1538 = vld [vmem:[%s3 + $0x54] sm:$0xf]
          %v1539 = vld [vmem:[%s3 + $0x58] sm:$0xf]
          %v1540 = vld [vmem:[%s3 + $0x5c] sm:$0xf]
          %v1541 = vld [vmem:[%s3 + $0x60] sm:$0xf]
          %v1542 = vld [vmem:[%s3 + $0x64] sm:$0xf]
          %v1543 = vld [vmem:[%s3 + $0x68] sm:$0xf]
          %v1544 = vld [vmem:[%s3 + $0x6c] sm:$0xf]
          %v1545 = vld [vmem:[%s3 + $0x70] sm:$0xf]
          %v1546 = vld [vmem:[%s3 + $0x74] sm:$0xf]
          %v1547 = vld [vmem:[%s3 + $0x78] sm:$0xf]
          %v1548 = vld [vmem:[%s3 + $0x7c] sm:$0xf]
          %v1581 = vunpack.c.l.b16 %v1517
          %v1582 = vunpack.c.l.b16 %v1518
          %v1583 = vunpack.c.l.b16 %v1519
          %v1584 = vunpack.c.l.b16 %v1520
          %v1585 = vunpack.c.l.b16 %v1521
          %v1586 = vunpack.c.l.b16 %v1522
          %v1587 = vunpack.c.l.b16 %v1523
          %v1588 = vunpack.c.l.b16 %v1524
          %v1589 = vunpack.c.l.b16 %v1525
          %v1590 = vunpack.c.l.b16 %v1526
          %v1591 = vunpack.c.l.b16 %v1527
          %v1592 = vunpack.c.l.b16 %v1528
          %v1593 = vunpack.c.l.b16 %v1529
          %v1594 = vunpack.c.l.b16 %v1530
          %v1595 = vunpack.c.l.b16 %v1531
          %v1596 = vunpack.c.l.b16 %v1532
          %v1597 = vunpack.c.l.b16 %v1533
          %v1598 = vunpack.c.l.b16 %v1534
          %v1599 = vunpack.c.l.b16 %v1535
          %v1600 = vunpack.c.l.b16 %v1536
          %v1601 = vunpack.c.l.b16 %v1537
          %v1602 = vunpack.c.l.b16 %v1538
          %v1603 = vunpack.c.l.b16 %v1539
          %v1604 = vunpack.c.l.b16 %v1540
          %v1605 = vunpack.c.l.b16 %v1541
          %v1606 = vunpack.c.l.b16 %v1542
          %v1607 = vunpack.c.l.b16 %v1543
          %v1608 = vunpack.c.l.b16 %v1544
          %v1609 = vunpack.c.l.b16 %v1545
          %v1610 = vunpack.c.l.b16 %v1546
          %v1611 = vunpack.c.l.b16 %v1547
          %v1612 = vunpack.c.l.b16 %v1548
          %v1613 = vpack.c.b16 %v1582, %v1581
          %v1614 = vpack.c.b16 %v1584, %v1583
          %v1615 = vpack.c.b16 %v1586, %v1585
          %v1616 = vpack.c.b16 %v1588, %v1587
          %v1617 = vpack.c.b16 %v1590, %v1589
          %v1618 = vpack.c.b16 %v1592, %v1591
          %v1619 = vpack.c.b16 %v1594, %v1593
          %v1620 = vpack.c.b16 %v1596, %v1595
          %v1621 = vpack.c.b16 %v1598, %v1597
          %v1622 = vpack.c.b16 %v1600, %v1599
          %v1623 = vpack.c.b16 %v1602, %v1601
          %v1624 = vpack.c.b16 %v1604, %v1603
          %v1625 = vpack.c.b16 %v1606, %v1605
          %v1626 = vpack.c.b16 %v1608, %v1607
          %v1627 = vpack.c.b16 %v1610, %v1609
          %v1628 = vpack.c.b16 %v1612, %v1611
          %1645 = vmatprep.subr.bf16.mxu0 0
          %1646 = vmatpush1.bf16.msra.mxu0 %v1613
          %1647 = vmatprep.subr.bf16.mxu0 0
          %1648 = vmatpush1.bf16.msra.mxu0 %v1614
          %1649 = vmatprep.subr.bf16.mxu0 0
          %1650 = vmatpush1.bf16.msra.mxu0 %v1615
          %1651 = vmatprep.subr.bf16.mxu0 0
          %1652 = vmatpush1.bf16.msra.mxu0 %v1616
          %1653 = vmatprep.subr.bf16.mxu0 0
          %1654 = vmatpush1.bf16.msra.mxu0 %v1617
          %1655 = vmatprep.subr.bf16.mxu0 0
          %1656 = vmatpush1.bf16.msra.mxu0 %v1618
          %1657 = vmatprep.subr.bf16.mxu0 0
          %1658 = vmatpush1.bf16.msra.mxu0 %v1619
          %1659 = vmatprep.subr.bf16.mxu0 0
          %1660 = vmatpush1.bf16.msra.mxu0 %v1620
          %1661 = vmatprep.subr.bf16.mxu0 0
          %1662 = vmatpush1.bf16.msra.mxu0 %v1621
          %1663 = vmatprep.subr.bf16.mxu0 0
          %1664 = vmatpush1.bf16.msra.mxu0 %v1622
          %1665 = vmatprep.subr.bf16.mxu0 0
          %1666 = vmatpush1.bf16.msra.mxu0 %v1623
          %1667 = vmatprep.subr.bf16.mxu0 0
          %1668 = vmatpush1.bf16.msra.mxu0 %v1624
          %1669 = vmatprep.subr.bf16.mxu0 0
          %1670 = vmatpush1.bf16.msra.mxu0 %v1625
          %1671 = vmatprep.subr.bf16.mxu0 0
          %1672 = vmatpush1.bf16.msra.mxu0 %v1626
          %1673 = vmatprep.subr.bf16.mxu0 0
          %1674 = vmatpush1.bf16.msra.mxu0 %v1627
          %1675 = vmatprep.subr.bf16.mxu0 0
          %1676 = vmatpush1.bf16.msra.mxu0 %v1628
          %1677 = vmatprep.mubr.bf16.mxu0 %v1516
          %1678 = vmatmul.mubr.bf16.gmra.mrb[0].mxu0 %v1515
          %v1679 = vpop.f32.mrb[0].mxu0
          %v1680 = vadd.f32 0.0, %v1679
          %v1681 = vpop.f32.mrb[0].mxu0
          %v1682 = vpop.f32.mrb[0].mxu0
          %v1683 = vpop.f32.mrb[0].mxu0
          %1684 = vdwg.mxu0
          %v1685 = vld [vmem:[%s4] sm:$0x1]
          %v1687 = vlaneseq
          %v1688 = vshrl.u32 %v1687, 7
          %v1689 = vsub.s32 0, %v1688
          %v1690 = vrot.slane %v1685, %v1689
          %v1692 = vmul.f32 %v1680, %v1690
          %1693 = vadd.xlane.f32.xlu0 %v1692
          %v1694 = vpop.xlane.xlu0 %1693
          %v1695 = vmul.f32 %v1680, %v1680
          %1696 = vadd.xlane.f32.xlu0 %v1695
          %v1697 = vpop.xlane.xlu0 %1696
          %v1698 = vmax.f32 %v1697, 1e-16
          %v1699 = vrsqrt.pop %v1698
          %v1700 = vmul.f32 %v1694, %v1699
          %vm1701 = vcmask 7168
          %v1702 = vsel %vm1701, %v1700, 0.0
          %1703 = vadd.xlane.f32.xlu0 %v1702
          %v1704 = vpop.xlane.xlu0 %1703
          %v1705 = vrot.slane %v1704, 4
          %v1706 = vadd.f32 %v1704, %v1705
          %v1707 = vrot.slane %v1706, 2
          %v1708 = vadd.f32 %v1706, %v1707
          %v1709 = vrot.slane %v1708, 1
          %v1710 = vadd.f32 %v1708, %v1709
          %s1711 = vtos %v1710
          %s1712 = smul.f32 %s1711, 0.5
          %s1713 = ssub.f32 1.0, %s1712
          %s1714 = scalar_lea.smem [#allocation3], 0
          %1715 = sst [smem:[%s1714]] %s1713
        $region48: #{cosine_loss_forward.1} parent=39 // pred_fallthru
          _
        // Predicated region
        $region49: #{cosine_loss_forward.1} parent=39 // pred_check
          %p1716 = pneg %p145
        $region50: #{cosine_loss_forward.1} parent=39 // pred_check_branch
          %1718 = sbr.rel (%p1716) target = $region52
        $region51: #{cosine_loss_forward.1} parent=39 // pred_region
          %s1720 = ssub.s32 16, 16
          %1721 = vsyncadd [#allocation4], %s1720
          %1724 = dma.smem_to_hbm [#allocation3], 16, %s5, [#allocation4]
        $region52: #{cosine_loss_forward.1} parent=39 // pred_fallthru
          _
        // Predicated region
        $region53: #{cosine_loss_forward.1} parent=39 // pred_check
          %p1725 = pneg %p145
        $region54: #{cosine_loss_forward.1} parent=39 // pred_check_branch
          %1727 = sbr.rel (%p1725) target = $region56
        $region55: #{cosine_loss_forward.1} parent=39 // pred_region
          %1728 = dma.done [#allocation4], 16
        $region56: #{cosine_loss_forward.1} parent=39 // pred_fallthru
          _
        %1729 = sfence
      $region40: #{cosine_loss_forward.1} parent=5 // pred_fallthru
        _
      %p1730 = scmp.le.s32.totalorder 2, %s12
      // Predicated region
      $region57: #{cosine_loss_forward.1} parent=5 // pred_check
        %p1731 = pneg %p1730
      $region58: #{cosine_loss_forward.1} parent=5 // pred_check_branch
        %1733 = sbr.rel (%p1731) target = $region60
      $region59: #{cosine_loss_forward.1} parent=5 // pred_region
        %s1734 = ssub.s32 %s12, 2
      $region60: #{cosine_loss_forward.1} parent=5 // pred_fallthru
        _
    $region6: #{cosine_loss_forward.1} parent=1 // loop_footer
      %s16 = sadd.s32 1, %s12
    $region7: #{cosine_loss_forward.1} parent=1 // loop_footer_branch
      %11 = sbr.rel target = $region3
    $region8: #{cosine_loss_forward.1} parent=1 // loop_exit
      _
    %1735 = vsyncpa [#allocation4], 1
    %s1736 = scalar_lea.sflag [#allocation4], 1
    %1737 = vsyncpa %s1736, 1

</llo_original>
